<compile_context>
chip_gen: v7x
topology: tpu7x:2x2x1
jax: 0.10.0
libtpu: 0.0.40
codegen_flags: <defaults>
</compile_context>

<pallas_src>
import functools

import jax
import jax.numpy as jnp
from jax import lax
from jax.experimental import pallas as pl
from jax.experimental.pallas import tpu as pltpu


def _lstm_kernel(x_ref,      # (T*B, In)   time-major rows (row = t*B + b)
                 wih1_ref,   # (In, 4H)    layer-1 input weights, gates [i,f,o,g]
                 whh1_ref,   # (H, 4H)     layer-1 recurrent weights
                 b1_ref,     # (1, 4H)     layer-1 combined bias (b_ih + b_hh)
                 w2_ref,     # (2H, 4H)    layer-2 [W_ih ; W_hh] fused
                 b2_ref,     # (1, 4H)     layer-2 combined bias
                 wfc_ref,    # (H, K)      FC weights
                 bfc_ref,    # (1, K)      FC bias
                 out_ref,    # (T*B, K)
                 gx_s,       # VMEM (T*B, 4H)  precomputed input projections
                 h2_s,       # VMEM (T*B, H)   stacked layer-2 hidden states
                 *, T, B):
    H = whh1_ref.shape[0]
    H3 = 3 * H

    # ---- prologue: input projection for every timestep at once (off the
    # serial recurrent critical path). input_size == 1 -> broadcast multiply.
    if x_ref.shape[1] == 1:
        gx_s[...] = x_ref[...] * wih1_ref[...] + b1_ref[...]
    else:
        gx_s[...] = (jnp.dot(x_ref[...], wih1_ref[...],
                             preferred_element_type=jnp.float32)
                     + b1_ref[...])

    # Loop-invariant weight loads, hoisted.
    whh1 = whh1_ref[...]
    w2 = w2_ref[...]
    b2 = b2_ref[...]

    def cell(gates, c_prev):
        # gate columns are [i | f | o | g]
        sig = jax.nn.sigmoid(gates[:, :H3])      # one contiguous sigmoid
        g = jnp.tanh(gates[:, H3:])              # one contiguous tanh
        c_new = sig[:, H:2 * H] * c_prev + sig[:, :H] * g
        h_new = sig[:, 2 * H:H3] * jnp.tanh(c_new)
        return h_new, c_new

    def step(t, carry):
        h1, c1, h2, c2 = carry
        row = pl.multiple_of(t * B, B)

        # ---- layer 1: only the recurrent matmul is on the serial path.
        gates1 = gx_s[pl.ds(row, B), :] + jnp.dot(
            h1, whh1, preferred_element_type=jnp.float32)
        h1, c1 = cell(gates1, c1)

        # ---- layer 2: single fused (B, 2H) @ (2H, 4H) matmul (K = 128).
        hcat = jnp.concatenate([h1, h2], axis=1)
        gates2 = jnp.dot(hcat, w2, preferred_element_type=jnp.float32) + b2
        h2, c2 = cell(gates2, c2)

        # Stash h2 for the deferred FC head.
        h2_s[pl.ds(row, B), :] = h2
        return (h1, c1, h2, c2)

    z = jnp.zeros((B, H), jnp.float32)
    lax.fori_loop(0, T, step, (z, z, z, z), unroll=True)

    # ---- epilogue: one batched FC over all timesteps + one output store.
    out_ref[...] = (jnp.dot(h2_s[...], wfc_ref[...],
                            preferred_element_type=jnp.float32)
                    + bfc_ref[...]).astype(out_ref.dtype)


@jax.jit
def model_forward(x, wih1, whh1, b1, w2, b2, wfc, bfc):
    """x: (B, T, input_size) float32  ->  (B, T, num_keys) float32."""
    B, T, In = x.shape
    H = whh1.shape[0]
    K = wfc.shape[1]

    # Time-major flattened rows: row t*B + b holds x[b, t, :].
    x_flat = jnp.transpose(x, (1, 0, 2)).reshape(T * B, In)

    kernel = functools.partial(_lstm_kernel, T=T, B=B)
    out_flat = pl.pallas_call(
        kernel,
        out_shape=jax.ShapeDtypeStruct((T * B, K), jnp.float32),
        in_specs=[pl.BlockSpec(memory_space=pltpu.MemorySpace.VMEM)] * 8,
        out_specs=pl.BlockSpec(memory_space=pltpu.MemorySpace.VMEM),
        scratch_shapes=[
            pltpu.VMEM((T * B, 4 * H), jnp.float32),   # gx: input projections
            pltpu.VMEM((T * B, H), jnp.float32),       # stacked h2 states
        ],
    )(x_flat, wih1, whh1, b1, w2, b2, wfc, bfc)

    return jnp.transpose(out_flat.reshape(T, B, K), (1, 0, 2))


# ---------------------------------------------------------------------------
# Parameter handling (PyTorch-layout params -> kernel-layout params)
# ---------------------------------------------------------------------------
def _reorder_gates(w):
    """Reorder the 4H gate axis from PyTorch's [i,f,g,o] to kernel [i,f,o,g]."""
    i, f, g, o = jnp.split(w, 4, axis=0)
    return jnp.concatenate([i, f, o, g], axis=0)


def prepare_kernel_params(w_ih_l0, w_hh_l0, b_ih_l0, b_hh_l0,
                          w_ih_l1, w_hh_l1, b_ih_l1, b_hh_l1, w_fc, b_fc):
    wih1 = _reorder_gates(w_ih_l0).T                     # (In, 4H)
    whh1 = _reorder_gates(w_hh_l0).T                     # (H, 4H)
    b1 = _reorder_gates(b_ih_l0 + b_hh_l0)[None, :]      # (1, 4H)
    w2 = jnp.concatenate([_reorder_gates(w_ih_l1).T,
                          _reorder_gates(w_hh_l1).T], axis=0)   # (2H, 4H)
    b2 = _reorder_gates(b_ih_l1 + b_hh_l1)[None, :]      # (1, 4H)
    wfc = w_fc.T                                         # (H, K)
    bfc = b_fc[None, :]                                  # (1, K)
    return wih1, whh1, b1, w2, b2, wfc, bfc


def init_params(key, input_size, hidden_size, num_keys):
    """Deterministic init with PyTorch shapes/layout (gate rows [i,f,g,o])."""
    H = hidden_size
    bound = 1.0 / jnp.sqrt(jnp.float32(H))
    keys = jax.random.split(key, 10)

    def u(k_, shape):
        return jax.random.uniform(k_, shape, jnp.float32, -bound, bound)

    w_ih_l0 = u(keys[0], (4 * H, input_size))
    w_hh_l0 = u(keys[1], (4 * H, H))
    b_ih_l0 = u(keys[2], (4 * H,))
    b_hh_l0 = u(keys[3], (4 * H,))
    w_ih_l1 = u(keys[4], (4 * H, H))
    w_hh_l1 = u(keys[5], (4 * H, H))
    b_ih_l1 = u(keys[6], (4 * H,))
    b_hh_l1 = u(keys[7], (4 * H,))
    w_fc = u(keys[8], (num_keys, H))
    b_fc = u(keys[9], (num_keys,))
    return (w_ih_l0, w_hh_l0, b_ih_l0, b_hh_l0,
            w_ih_l1, w_hh_l1, b_ih_l1, b_hh_l1, w_fc, b_fc)


def model_forward_ref(x, torch_params):
    """Pure-JAX reference matching PyTorch LSTM semantics (gate order i,f,g,o)."""
    (w_ih_l0, w_hh_l0, b_ih_l0, b_hh_l0,
     w_ih_l1, w_hh_l1, b_ih_l1, b_hh_l1, w_fc, b_fc) = torch_params
    B = x.shape[0]
    H = w_hh_l0.shape[1]

    def cell(h, c, pre):
        i, f, g, o = jnp.split(pre, 4, axis=-1)
        c_new = jax.nn.sigmoid(f) * c + jax.nn.sigmoid(i) * jnp.tanh(g)
        h_new = jax.nn.sigmoid(o) * jnp.tanh(c_new)
        return h_new, c_new

    def step(carry, x_t):
        h1, c1, h2, c2 = carry
        h1, c1 = cell(h1, c1, x_t @ w_ih_l0.T + h1 @ w_hh_l0.T + b_ih_l0 + b_hh_l0)
        h2, c2 = cell(h2, c2, h1 @ w_ih_l1.T + h2 @ w_hh_l1.T + b_ih_l1 + b_hh_l1)
        return (h1, c1, h2, c2), h2 @ w_fc.T + b_fc

    init = tuple(jnp.zeros((B, H), jnp.float32) for _ in range(4))
    _, out = lax.scan(step, init, jnp.transpose(x, (1, 0, 2)))
    return jnp.transpose(out, (1, 0, 2))


if __name__ == "__main__":
    B, T = 8, 8
    INPUT_SIZE, HIDDEN, NUM_KEYS = 1, 64, 16

    root = jax.random.PRNGKey(0)
    kx, kp = jax.random.split(root)
    x = jax.random.normal(kx, (B, T, INPUT_SIZE), jnp.float32)

    torch_params = init_params(kp, INPUT_SIZE, HIDDEN, NUM_KEYS)
    kernel_params = prepare_kernel_params(*torch_params)

    out = model_forward(x, *kernel_params)
    out = jax.block_until_ready(out)

    ref = model_forward_ref(x, torch_params)
    assert out.shape == (B, T, NUM_KEYS)
    assert jnp.allclose(out, ref, rtol=1e-4, atol=1e-4), "mismatch vs JAX reference"

    print("KERNEL_OK")
</pallas_src>

<mosaic_0001>
module attributes {stable_mosaic.version = 11 : i64} {
  func.func @_lstm_kernel(%arg0: memref<64x1xf32, #tpu.memory_space<vmem>>, %arg1: memref<1x256xf32, #tpu.memory_space<vmem>>, %arg2: memref<64x256xf32, #tpu.memory_space<vmem>>, %arg3: memref<1x256xf32, #tpu.memory_space<vmem>>, %arg4: memref<128x256xf32, #tpu.memory_space<vmem>>, %arg5: memref<1x256xf32, #tpu.memory_space<vmem>>, %arg6: memref<64x16xf32, #tpu.memory_space<vmem>>, %arg7: memref<1x16xf32, #tpu.memory_space<vmem>>, %arg8: memref<64x16xf32, #tpu.memory_space<vmem>>, %arg9: memref<64x256xf32, #tpu.memory_space<vmem>>, %arg10: memref<64x64xf32, #tpu.memory_space<vmem>>) attributes {dimension_semantics = [], scalar_prefetch = 0 : i64, scratch_operands = 2 : i64, tpu.core_type = #tpu.core_type<tc>} {
    %c0 = arith.constant 0 : index
    %c0_0 = arith.constant 0 : index
    %0 = vector.load %arg0[%c0, %c0_0] : memref<64x1xf32, #tpu.memory_space<vmem>>, vector<64x1xf32>
    %c0_1 = arith.constant 0 : index
    %c0_2 = arith.constant 0 : index
    %1 = vector.load %arg1[%c0_1, %c0_2] : memref<1x256xf32, #tpu.memory_space<vmem>>, vector<1x256xf32>
    %2 = vector.broadcast %0 : vector<64x1xf32> to vector<64x256xf32>
    %3 = vector.broadcast %1 : vector<1x256xf32> to vector<64x256xf32>
    %4 = arith.mulf %2, %3 : vector<64x256xf32>
    %c0_3 = arith.constant 0 : index
    %c0_4 = arith.constant 0 : index
    %5 = vector.load %arg3[%c0_3, %c0_4] : memref<1x256xf32, #tpu.memory_space<vmem>>, vector<1x256xf32>
    %6 = vector.broadcast %5 : vector<1x256xf32> to vector<64x256xf32>
    %7 = arith.addf %4, %6 : vector<64x256xf32>
    %c0_5 = arith.constant 0 : index
    %c0_6 = arith.constant 0 : index
    %8 = vector.load %arg9[%c0_5, %c0_6] : memref<64x256xf32, #tpu.memory_space<vmem>>, vector<64x256xf32>
    tpu.vector_store %arg9[%c0_5, %c0_6], %7 {strides = array<i32>} : memref<64x256xf32, #tpu.memory_space<vmem>>, vector<64x256xf32>,
    %c0_7 = arith.constant 0 : index
    %c0_8 = arith.constant 0 : index
    %9 = vector.load %arg2[%c0_7, %c0_8] : memref<64x256xf32, #tpu.memory_space<vmem>>, vector<64x256xf32>
    %c0_9 = arith.constant 0 : index
    %c0_10 = arith.constant 0 : index
    %10 = vector.load %arg4[%c0_9, %c0_10] : memref<128x256xf32, #tpu.memory_space<vmem>>, vector<128x256xf32>
    %c0_11 = arith.constant 0 : index
    %c0_12 = arith.constant 0 : index
    %11 = vector.load %arg5[%c0_11, %c0_12] : memref<1x256xf32, #tpu.memory_space<vmem>>, vector<1x256xf32>
    %cst = arith.constant 0.000000e+00 : f32
    %12 = vector.broadcast %cst : f32 to vector<8x64xf32>
    %c0_i32 = arith.constant 0 : i32
    %c8_i32 = arith.constant 8 : i32
    %13 = arith.muli %c0_i32, %c8_i32 : i32
    %14 = tpu.assume_multiple %13, 8 : i32
    %15 = arith.index_cast %14 : i32 to index
    %c0_13 = arith.constant 0 : index
    %16 = vector.load %arg9[%15, %c0_13] : memref<64x256xf32, #tpu.memory_space<vmem>>, vector<8x256xf32>
    %cst_14 = arith.constant dense<0.000000e+00> : vector<8x256xf32>
    %17 = tpu.matmul %12, %9, %cst_14 {dimension_numbers = #tpu.dot_dimension_numbers<[1], [0], [0], [1], [0, 0, 1, 1], [], []>} : vector<8x64xf32>, vector<64x256xf32>, vector<8x256xf32> -> vector<8x256xf32>
    %18 = arith.addf %16, %17 : vector<8x256xf32>
    %19 = vector.extract_strided_slice %18 {offsets = [0, 0], sizes = [8, 192], strides = [1, 1]} : vector<8x256xf32> to vector<8x192xf32>
    %20 = arith.negf %19 : vector<8x192xf32>
    %21 = math.exp %20 : vector<8x192xf32>
    %cst_15 = arith.constant 1.000000e+00 : f32
    %22 = vector.broadcast %cst_15 : f32 to vector<8x192xf32>
    %23 = arith.addf %22, %21 : vector<8x192xf32>
    %24 = arith.divf %22, %23 : vector<8x192xf32>
    %25 = vector.extract_strided_slice %18 {offsets = [0, 192], sizes = [8, 64], strides = [1, 1]} : vector<8x256xf32> to vector<8x64xf32>
    %26 = math.tanh %25 : vector<8x64xf32>
    %27 = vector.extract_strided_slice %24 {offsets = [0, 64], sizes = [8, 64], strides = [1, 1]} : vector<8x192xf32> to vector<8x64xf32>
    %28 = arith.mulf %27, %12 : vector<8x64xf32>
    %29 = vector.extract_strided_slice %24 {offsets = [0, 0], sizes = [8, 64], strides = [1, 1]} : vector<8x192xf32> to vector<8x64xf32>
    %30 = arith.mulf %29, %26 : vector<8x64xf32>
    %31 = arith.addf %28, %30 : vector<8x64xf32>
    %32 = vector.extract_strided_slice %24 {offsets = [0, 128], sizes = [8, 64], strides = [1, 1]} : vector<8x192xf32> to vector<8x64xf32>
    %33 = math.tanh %31 : vector<8x64xf32>
    %34 = arith.mulf %32, %33 : vector<8x64xf32>
    %35 = tpu.concatenate %34, %12 in 1 : vector<8x64xf32>, vector<8x64xf32> -> vector<8x128xf32>
    %cst_16 = arith.constant dense<0.000000e+00> : vector<8x256xf32>
    %36 = tpu.matmul %35, %10, %cst_16 {dimension_numbers = #tpu.dot_dimension_numbers<[1], [0], [0], [1], [0, 0, 1, 1], [], []>} : vector<8x128xf32>, vector<128x256xf32>, vector<8x256xf32> -> vector<8x256xf32>
    %37 = vector.broadcast %11 : vector<1x256xf32> to vector<8x256xf32>
    %38 = arith.addf %36, %37 : vector<8x256xf32>
    %39 = vector.extract_strided_slice %38 {offsets = [0, 0], sizes = [8, 192], strides = [1, 1]} : vector<8x256xf32> to vector<8x192xf32>
    %40 = arith.negf %39 : vector<8x192xf32>
    %41 = math.exp %40 : vector<8x192xf32>
    %cst_17 = arith.constant 1.000000e+00 : f32
    %42 = vector.broadcast %cst_17 : f32 to vector<8x192xf32>
    %43 = arith.addf %42, %41 : vector<8x192xf32>
    %44 = arith.divf %42, %43 : vector<8x192xf32>
    %45 = vector.extract_strided_slice %38 {offsets = [0, 192], sizes = [8, 64], strides = [1, 1]} : vector<8x256xf32> to vector<8x64xf32>
    %46 = math.tanh %45 : vector<8x64xf32>
    %47 = vector.extract_strided_slice %44 {offsets = [0, 64], sizes = [8, 64], strides = [1, 1]} : vector<8x192xf32> to vector<8x64xf32>
    %48 = arith.mulf %47, %12 : vector<8x64xf32>
    %49 = vector.extract_strided_slice %44 {offsets = [0, 0], sizes = [8, 64], strides = [1, 1]} : vector<8x192xf32> to vector<8x64xf32>
    %50 = arith.mulf %49, %46 : vector<8x64xf32>
    %51 = arith.addf %48, %50 : vector<8x64xf32>
    %52 = vector.extract_strided_slice %44 {offsets = [0, 128], sizes = [8, 64], strides = [1, 1]} : vector<8x192xf32> to vector<8x64xf32>
    %53 = math.tanh %51 : vector<8x64xf32>
    %54 = arith.mulf %52, %53 : vector<8x64xf32>
    %55 = arith.index_cast %14 : i32 to index
    %c0_18 = arith.constant 0 : index
    %56 = vector.load %arg10[%55, %c0_18] : memref<64x64xf32, #tpu.memory_space<vmem>>, vector<8x64xf32>
    tpu.vector_store %arg10[%55, %c0_18], %54 {strides = array<i32>} : memref<64x64xf32, #tpu.memory_space<vmem>>, vector<8x64xf32>,
    %c1_i32 = arith.constant 1 : i32
    %c8_i32_19 = arith.constant 8 : i32
    %57 = arith.muli %c1_i32, %c8_i32_19 : i32
    %58 = tpu.assume_multiple %57, 8 : i32
    %59 = arith.index_cast %58 : i32 to index
    %c0_20 = arith.constant 0 : index
    %60 = vector.load %arg9[%59, %c0_20] : memref<64x256xf32, #tpu.memory_space<vmem>>, vector<8x256xf32>
    %cst_21 = arith.constant dense<0.000000e+00> : vector<8x256xf32>
    %61 = tpu.matmul %34, %9, %cst_21 {dimension_numbers = #tpu.dot_dimension_numbers<[1], [0], [0], [1], [0, 0, 1, 1], [], []>} : vector<8x64xf32>, vector<64x256xf32>, vector<8x256xf32> -> vector<8x256xf32>
    %62 = arith.addf %60, %61 : vector<8x256xf32>
    %63 = vector.extract_strided_slice %62 {offsets = [0, 0], sizes = [8, 192], strides = [1, 1]} : vector<8x256xf32> to vector<8x192xf32>
    %64 = arith.negf %63 : vector<8x192xf32>
    %65 = math.exp %64 : vector<8x192xf32>
    %cst_22 = arith.constant 1.000000e+00 : f32
    %66 = vector.broadcast %cst_22 : f32 to vector<8x192xf32>
    %67 = arith.addf %66, %65 : vector<8x192xf32>
    %68 = arith.divf %66, %67 : vector<8x192xf32>
    %69 = vector.extract_strided_slice %62 {offsets = [0, 192], sizes = [8, 64], strides = [1, 1]} : vector<8x256xf32> to vector<8x64xf32>
    %70 = math.tanh %69 : vector<8x64xf32>
    %71 = vector.extract_strided_slice %68 {offsets = [0, 64], sizes = [8, 64], strides = [1, 1]} : vector<8x192xf32> to vector<8x64xf32>
    %72 = arith.mulf %71, %31 : vector<8x64xf32>
    %73 = vector.extract_strided_slice %68 {offsets = [0, 0], sizes = [8, 64], strides = [1, 1]} : vector<8x192xf32> to vector<8x64xf32>
    %74 = arith.mulf %73, %70 : vector<8x64xf32>
    %75 = arith.addf %72, %74 : vector<8x64xf32>
    %76 = vector.extract_strided_slice %68 {offsets = [0, 128], sizes = [8, 64], strides = [1, 1]} : vector<8x192xf32> to vector<8x64xf32>
    %77 = math.tanh %75 : vector<8x64xf32>
    %78 = arith.mulf %76, %77 : vector<8x64xf32>
    %79 = tpu.concatenate %78, %54 in 1 : vector<8x64xf32>, vector<8x64xf32> -> vector<8x128xf32>
    %cst_23 = arith.constant dense<0.000000e+00> : vector<8x256xf32>
    %80 = tpu.matmul %79, %10, %cst_23 {dimension_numbers = #tpu.dot_dimension_numbers<[1], [0], [0], [1], [0, 0, 1, 1], [], []>} : vector<8x128xf32>, vector<128x256xf32>, vector<8x256xf32> -> vector<8x256xf32>
    %81 = vector.broadcast %11 : vector<1x256xf32> to vector<8x256xf32>
    %82 = arith.addf %80, %81 : vector<8x256xf32>
    %83 = vector.extract_strided_slice %82 {offsets = [0, 0], sizes = [8, 192], strides = [1, 1]} : vector<8x256xf32> to vector<8x192xf32>
    %84 = arith.negf %83 : vector<8x192xf32>
    %85 = math.exp %84 : vector<8x192xf32>
    %cst_24 = arith.constant 1.000000e+00 : f32
    %86 = vector.broadcast %cst_24 : f32 to vector<8x192xf32>
    %87 = arith.addf %86, %85 : vector<8x192xf32>
    %88 = arith.divf %86, %87 : vector<8x192xf32>
    %89 = vector.extract_strided_slice %82 {offsets = [0, 192], sizes = [8, 64], strides = [1, 1]} : vector<8x256xf32> to vector<8x64xf32>
    %90 = math.tanh %89 : vector<8x64xf32>
    %91 = vector.extract_strided_slice %88 {offsets = [0, 64], sizes = [8, 64], strides = [1, 1]} : vector<8x192xf32> to vector<8x64xf32>
    %92 = arith.mulf %91, %51 : vector<8x64xf32>
    %93 = vector.extract_strided_slice %88 {offsets = [0, 0], sizes = [8, 64], strides = [1, 1]} : vector<8x192xf32> to vector<8x64xf32>
    %94 = arith.mulf %93, %90 : vector<8x64xf32>
    %95 = arith.addf %92, %94 : vector<8x64xf32>
    %96 = vector.extract_strided_slice %88 {offsets = [0, 128], sizes = [8, 64], strides = [1, 1]} : vector<8x192xf32> to vector<8x64xf32>
    %97 = math.tanh %95 : vector<8x64xf32>
    %98 = arith.mulf %96, %97 : vector<8x64xf32>
    %99 = arith.index_cast %58 : i32 to index
    %c0_25 = arith.constant 0 : index
    %100 = vector.load %arg10[%99, %c0_25] : memref<64x64xf32, #tpu.memory_space<vmem>>, vector<8x64xf32>
    tpu.vector_store %arg10[%99, %c0_25], %98 {strides = array<i32>} : memref<64x64xf32, #tpu.memory_space<vmem>>, vector<8x64xf32>,
    %c2_i32 = arith.constant 2 : i32
    %c8_i32_26 = arith.constant 8 : i32
    %101 = arith.muli %c2_i32, %c8_i32_26 : i32
    %102 = tpu.assume_multiple %101, 8 : i32
    %103 = arith.index_cast %102 : i32 to index
    %c0_27 = arith.constant 0 : index
    %104 = vector.load %arg9[%103, %c0_27] : memref<64x256xf32, #tpu.memory_space<vmem>>, vector<8x256xf32>
    %cst_28 = arith.constant dense<0.000000e+00> : vector<8x256xf32>
    %105 = tpu.matmul %78, %9, %cst_28 {dimension_numbers = #tpu.dot_dimension_numbers<[1], [0], [0], [1], [0, 0, 1, 1], [], []>} : vector<8x64xf32>, vector<64x256xf32>, vector<8x256xf32> -> vector<8x256xf32>
    %106 = arith.addf %104, %105 : vector<8x256xf32>
    %107 = vector.extract_strided_slice %106 {offsets = [0, 0], sizes = [8, 192], strides = [1, 1]} : vector<8x256xf32> to vector<8x192xf32>
    %108 = arith.negf %107 : vector<8x192xf32>
    %109 = math.exp %108 : vector<8x192xf32>
    %cst_29 = arith.constant 1.000000e+00 : f32
    %110 = vector.broadcast %cst_29 : f32 to vector<8x192xf32>
    %111 = arith.addf %110, %109 : vector<8x192xf32>
    %112 = arith.divf %110, %111 : vector<8x192xf32>
    %113 = vector.extract_strided_slice %106 {offsets = [0, 192], sizes = [8, 64], strides = [1, 1]} : vector<8x256xf32> to vector<8x64xf32>
    %114 = math.tanh %113 : vector<8x64xf32>
    %115 = vector.extract_strided_slice %112 {offsets = [0, 64], sizes = [8, 64], strides = [1, 1]} : vector<8x192xf32> to vector<8x64xf32>
    %116 = arith.mulf %115, %75 : vector<8x64xf32>
    %117 = vector.extract_strided_slice %112 {offsets = [0, 0], sizes = [8, 64], strides = [1, 1]} : vector<8x192xf32> to vector<8x64xf32>
    %118 = arith.mulf %117, %114 : vector<8x64xf32>
    %119 = arith.addf %116, %118 : vector<8x64xf32>
    %120 = vector.extract_strided_slice %112 {offsets = [0, 128], sizes = [8, 64], strides = [1, 1]} : vector<8x192xf32> to vector<8x64xf32>
    %121 = math.tanh %119 : vector<8x64xf32>
    %122 = arith.mulf %120, %121 : vector<8x64xf32>
    %123 = tpu.concatenate %122, %98 in 1 : vector<8x64xf32>, vector<8x64xf32> -> vector<8x128xf32>
    %cst_30 = arith.constant dense<0.000000e+00> : vector<8x256xf32>
    %124 = tpu.matmul %123, %10, %cst_30 {dimension_numbers = #tpu.dot_dimension_numbers<[1], [0], [0], [1], [0, 0, 1, 1], [], []>} : vector<8x128xf32>, vector<128x256xf32>, vector<8x256xf32> -> vector<8x256xf32>
    %125 = vector.broadcast %11 : vector<1x256xf32> to vector<8x256xf32>
    %126 = arith.addf %124, %125 : vector<8x256xf32>
    %127 = vector.extract_strided_slice %126 {offsets = [0, 0], sizes = [8, 192], strides = [1, 1]} : vector<8x256xf32> to vector<8x192xf32>
    %128 = arith.negf %127 : vector<8x192xf32>
    %129 = math.exp %128 : vector<8x192xf32>
    %cst_31 = arith.constant 1.000000e+00 : f32
    %130 = vector.broadcast %cst_31 : f32 to vector<8x192xf32>
    %131 = arith.addf %130, %129 : vector<8x192xf32>
    %132 = arith.divf %130, %131 : vector<8x192xf32>
    %133 = vector.extract_strided_slice %126 {offsets = [0, 192], sizes = [8, 64], strides = [1, 1]} : vector<8x256xf32> to vector<8x64xf32>
    %134 = math.tanh %133 : vector<8x64xf32>
    %135 = vector.extract_strided_slice %132 {offsets = [0, 64], sizes = [8, 64], strides = [1, 1]} : vector<8x192xf32> to vector<8x64xf32>
    %136 = arith.mulf %135, %95 : vector<8x64xf32>
    %137 = vector.extract_strided_slice %132 {offsets = [0, 0], sizes = [8, 64], strides = [1, 1]} : vector<8x192xf32> to vector<8x64xf32>
    %138 = arith.mulf %137, %134 : vector<8x64xf32>
    %139 = arith.addf %136, %138 : vector<8x64xf32>
    %140 = vector.extract_strided_slice %132 {offsets = [0, 128], sizes = [8, 64], strides = [1, 1]} : vector<8x192xf32> to vector<8x64xf32>
    %141 = math.tanh %139 : vector<8x64xf32>
    %142 = arith.mulf %140, %141 : vector<8x64xf32>
    %143 = arith.index_cast %102 : i32 to index
    %c0_32 = arith.constant 0 : index
    %144 = vector.load %arg10[%143, %c0_32] : memref<64x64xf32, #tpu.memory_space<vmem>>, vector<8x64xf32>
    tpu.vector_store %arg10[%143, %c0_32], %142 {strides = array<i32>} : memref<64x64xf32, #tpu.memory_space<vmem>>, vector<8x64xf32>,
    %c3_i32 = arith.constant 3 : i32
    %c8_i32_33 = arith.constant 8 : i32
    %145 = arith.muli %c3_i32, %c8_i32_33 : i32
    %146 = tpu.assume_multiple %145, 8 : i32
    %147 = arith.index_cast %146 : i32 to index
    %c0_34 = arith.constant 0 : index
    %148 = vector.load %arg9[%147, %c0_34] : memref<64x256xf32, #tpu.memory_space<vmem>>, vector<8x256xf32>
    %cst_35 = arith.constant dense<0.000000e+00> : vector<8x256xf32>
    %149 = tpu.matmul %122, %9, %cst_35 {dimension_numbers = #tpu.dot_dimension_numbers<[1], [0], [0], [1], [0, 0, 1, 1], [], []>} : vector<8x64xf32>, vector<64x256xf32>, vector<8x256xf32> -> vector<8x256xf32>
    %150 = arith.addf %148, %149 : vector<8x256xf32>
    %151 = vector.extract_strided_slice %150 {offsets = [0, 0], sizes = [8, 192], strides = [1, 1]} : vector<8x256xf32> to vector<8x192xf32>
    %152 = arith.negf %151 : vector<8x192xf32>
    %153 = math.exp %152 : vector<8x192xf32>
    %cst_36 = arith.constant 1.000000e+00 : f32
    %154 = vector.broadcast %cst_36 : f32 to vector<8x192xf32>
    %155 = arith.addf %154, %153 : vector<8x192xf32>
    %156 = arith.divf %154, %155 : vector<8x192xf32>
    %157 = vector.extract_strided_slice %150 {offsets = [0, 192], sizes = [8, 64], strides = [1, 1]} : vector<8x256xf32> to vector<8x64xf32>
    %158 = math.tanh %157 : vector<8x64xf32>
    %159 = vector.extract_strided_slice %156 {offsets = [0, 64], sizes = [8, 64], strides = [1, 1]} : vector<8x192xf32> to vector<8x64xf32>
    %160 = arith.mulf %159, %119 : vector<8x64xf32>
    %161 = vector.extract_strided_slice %156 {offsets = [0, 0], sizes = [8, 64], strides = [1, 1]} : vector<8x192xf32> to vector<8x64xf32>
    %162 = arith.mulf %161, %158 : vector<8x64xf32>
    %163 = arith.addf %160, %162 : vector<8x64xf32>
    %164 = vector.extract_strided_slice %156 {offsets = [0, 128], sizes = [8, 64], strides = [1, 1]} : vector<8x192xf32> to vector<8x64xf32>
    %165 = math.tanh %163 : vector<8x64xf32>
    %166 = arith.mulf %164, %165 : vector<8x64xf32>
    %167 = tpu.concatenate %166, %142 in 1 : vector<8x64xf32>, vector<8x64xf32> -> vector<8x128xf32>
    %cst_37 = arith.constant dense<0.000000e+00> : vector<8x256xf32>
    %168 = tpu.matmul %167, %10, %cst_37 {dimension_numbers = #tpu.dot_dimension_numbers<[1], [0], [0], [1], [0, 0, 1, 1], [], []>} : vector<8x128xf32>, vector<128x256xf32>, vector<8x256xf32> -> vector<8x256xf32>
    %169 = vector.broadcast %11 : vector<1x256xf32> to vector<8x256xf32>
    %170 = arith.addf %168, %169 : vector<8x256xf32>
    %171 = vector.extract_strided_slice %170 {offsets = [0, 0], sizes = [8, 192], strides = [1, 1]} : vector<8x256xf32> to vector<8x192xf32>
    %172 = arith.negf %171 : vector<8x192xf32>
    %173 = math.exp %172 : vector<8x192xf32>
    %cst_38 = arith.constant 1.000000e+00 : f32
    %174 = vector.broadcast %cst_38 : f32 to vector<8x192xf32>
    %175 = arith.addf %174, %173 : vector<8x192xf32>
    %176 = arith.divf %174, %175 : vector<8x192xf32>
    %177 = vector.extract_strided_slice %170 {offsets = [0, 192], sizes = [8, 64], strides = [1, 1]} : vector<8x256xf32> to vector<8x64xf32>
    %178 = math.tanh %177 : vector<8x64xf32>
    %179 = vector.extract_strided_slice %176 {offsets = [0, 64], sizes = [8, 64], strides = [1, 1]} : vector<8x192xf32> to vector<8x64xf32>
    %180 = arith.mulf %179, %139 : vector<8x64xf32>
    %181 = vector.extract_strided_slice %176 {offsets = [0, 0], sizes = [8, 64], strides = [1, 1]} : vector<8x192xf32> to vector<8x64xf32>
    %182 = arith.mulf %181, %178 : vector<8x64xf32>
    %183 = arith.addf %180, %182 : vector<8x64xf32>
    %184 = vector.extract_strided_slice %176 {offsets = [0, 128], sizes = [8, 64], strides = [1, 1]} : vector<8x192xf32> to vector<8x64xf32>
    %185 = math.tanh %183 : vector<8x64xf32>
    %186 = arith.mulf %184, %185 : vector<8x64xf32>
    %187 = arith.index_cast %146 : i32 to index
    %c0_39 = arith.constant 0 : index
    %188 = vector.load %arg10[%187, %c0_39] : memref<64x64xf32, #tpu.memory_space<vmem>>, vector<8x64xf32>
    tpu.vector_store %arg10[%187, %c0_39], %186 {strides = array<i32>} : memref<64x64xf32, #tpu.memory_space<vmem>>, vector<8x64xf32>,
    %c4_i32 = arith.constant 4 : i32
    %c8_i32_40 = arith.constant 8 : i32
    %189 = arith.muli %c4_i32, %c8_i32_40 : i32
    %190 = tpu.assume_multiple %189, 8 : i32
    %191 = arith.index_cast %190 : i32 to index
    %c0_41 = arith.constant 0 : index
    %192 = vector.load %arg9[%191, %c0_41] : memref<64x256xf32, #tpu.memory_space<vmem>>, vector<8x256xf32>
    %cst_42 = arith.constant dense<0.000000e+00> : vector<8x256xf32>
    %193 = tpu.matmul %166, %9, %cst_42 {dimension_numbers = #tpu.dot_dimension_numbers<[1], [0], [0], [1], [0, 0, 1, 1], [], []>} : vector<8x64xf32>, vector<64x256xf32>, vector<8x256xf32> -> vector<8x256xf32>
    %194 = arith.addf %192, %193 : vector<8x256xf32>
    %195 = vector.extract_strided_slice %194 {offsets = [0, 0], sizes = [8, 192], strides = [1, 1]} : vector<8x256xf32> to vector<8x192xf32>
    %196 = arith.negf %195 : vector<8x192xf32>
    %197 = math.exp %196 : vector<8x192xf32>
    %cst_43 = arith.constant 1.000000e+00 : f32
    %198 = vector.broadcast %cst_43 : f32 to vector<8x192xf32>
    %199 = arith.addf %198, %197 : vector<8x192xf32>
    %200 = arith.divf %198, %199 : vector<8x192xf32>
    %201 = vector.extract_strided_slice %194 {offsets = [0, 192], sizes = [8, 64], strides = [1, 1]} : vector<8x256xf32> to vector<8x64xf32>
    %202 = math.tanh %201 : vector<8x64xf32>
    %203 = vector.extract_strided_slice %200 {offsets = [0, 64], sizes = [8, 64], strides = [1, 1]} : vector<8x192xf32> to vector<8x64xf32>
    %204 = arith.mulf %203, %163 : vector<8x64xf32>
    %205 = vector.extract_strided_slice %200 {offsets = [0, 0], sizes = [8, 64], strides = [1, 1]} : vector<8x192xf32> to vector<8x64xf32>
    %206 = arith.mulf %205, %202 : vector<8x64xf32>
    %207 = arith.addf %204, %206 : vector<8x64xf32>
    %208 = vector.extract_strided_slice %200 {offsets = [0, 128], sizes = [8, 64], strides = [1, 1]} : vector<8x192xf32> to vector<8x64xf32>
    %209 = math.tanh %207 : vector<8x64xf32>
    %210 = arith.mulf %208, %209 : vector<8x64xf32>
    %211 = tpu.concatenate %210, %186 in 1 : vector<8x64xf32>, vector<8x64xf32> -> vector<8x128xf32>
    %cst_44 = arith.constant dense<0.000000e+00> : vector<8x256xf32>
    %212 = tpu.matmul %211, %10, %cst_44 {dimension_numbers = #tpu.dot_dimension_numbers<[1], [0], [0], [1], [0, 0, 1, 1], [], []>} : vector<8x128xf32>, vector<128x256xf32>, vector<8x256xf32> -> vector<8x256xf32>
    %213 = vector.broadcast %11 : vector<1x256xf32> to vector<8x256xf32>
    %214 = arith.addf %212, %213 : vector<8x256xf32>
    %215 = vector.extract_strided_slice %214 {offsets = [0, 0], sizes = [8, 192], strides = [1, 1]} : vector<8x256xf32> to vector<8x192xf32>
    %216 = arith.negf %215 : vector<8x192xf32>
    %217 = math.exp %216 : vector<8x192xf32>
    %cst_45 = arith.constant 1.000000e+00 : f32
    %218 = vector.broadcast %cst_45 : f32 to vector<8x192xf32>
    %219 = arith.addf %218, %217 : vector<8x192xf32>
    %220 = arith.divf %218, %219 : vector<8x192xf32>
    %221 = vector.extract_strided_slice %214 {offsets = [0, 192], sizes = [8, 64], strides = [1, 1]} : vector<8x256xf32> to vector<8x64xf32>
    %222 = math.tanh %221 : vector<8x64xf32>
    %223 = vector.extract_strided_slice %220 {offsets = [0, 64], sizes = [8, 64], strides = [1, 1]} : vector<8x192xf32> to vector<8x64xf32>
    %224 = arith.mulf %223, %183 : vector<8x64xf32>
    %225 = vector.extract_strided_slice %220 {offsets = [0, 0], sizes = [8, 64], strides = [1, 1]} : vector<8x192xf32> to vector<8x64xf32>
    %226 = arith.mulf %225, %222 : vector<8x64xf32>
    %227 = arith.addf %224, %226 : vector<8x64xf32>
    %228 = vector.extract_strided_slice %220 {offsets = [0, 128], sizes = [8, 64], strides = [1, 1]} : vector<8x192xf32> to vector<8x64xf32>
    %229 = math.tanh %227 : vector<8x64xf32>
    %230 = arith.mulf %228, %229 : vector<8x64xf32>
    %231 = arith.index_cast %190 : i32 to index
    %c0_46 = arith.constant 0 : index
    %232 = vector.load %arg10[%231, %c0_46] : memref<64x64xf32, #tpu.memory_space<vmem>>, vector<8x64xf32>
    tpu.vector_store %arg10[%231, %c0_46], %230 {strides = array<i32>} : memref<64x64xf32, #tpu.memory_space<vmem>>, vector<8x64xf32>,
    %c5_i32 = arith.constant 5 : i32
    %c8_i32_47 = arith.constant 8 : i32
    %233 = arith.muli %c5_i32, %c8_i32_47 : i32
    %234 = tpu.assume_multiple %233, 8 : i32
    %235 = arith.index_cast %234 : i32 to index
    %c0_48 = arith.constant 0 : index
    %236 = vector.load %arg9[%235, %c0_48] : memref<64x256xf32, #tpu.memory_space<vmem>>, vector<8x256xf32>
    %cst_49 = arith.constant dense<0.000000e+00> : vector<8x256xf32>
    %237 = tpu.matmul %210, %9, %cst_49 {dimension_numbers = #tpu.dot_dimension_numbers<[1], [0], [0], [1], [0, 0, 1, 1], [], []>} : vector<8x64xf32>, vector<64x256xf32>, vector<8x256xf32> -> vector<8x256xf32>
    %238 = arith.addf %236, %237 : vector<8x256xf32>
    %239 = vector.extract_strided_slice %238 {offsets = [0, 0], sizes = [8, 192], strides = [1, 1]} : vector<8x256xf32> to vector<8x192xf32>
    %240 = arith.negf %239 : vector<8x192xf32>
    %241 = math.exp %240 : vector<8x192xf32>
    %cst_50 = arith.constant 1.000000e+00 : f32
    %242 = vector.broadcast %cst_50 : f32 to vector<8x192xf32>
    %243 = arith.addf %242, %241 : vector<8x192xf32>
    %244 = arith.divf %242, %243 : vector<8x192xf32>
    %245 = vector.extract_strided_slice %238 {offsets = [0, 192], sizes = [8, 64], strides = [1, 1]} : vector<8x256xf32> to vector<8x64xf32>
    %246 = math.tanh %245 : vector<8x64xf32>
    %247 = vector.extract_strided_slice %244 {offsets = [0, 64], sizes = [8, 64], strides = [1, 1]} : vector<8x192xf32> to vector<8x64xf32>
    %248 = arith.mulf %247, %207 : vector<8x64xf32>
    %249 = vector.extract_strided_slice %244 {offsets = [0, 0], sizes = [8, 64], strides = [1, 1]} : vector<8x192xf32> to vector<8x64xf32>
    %250 = arith.mulf %249, %246 : vector<8x64xf32>
    %251 = arith.addf %248, %250 : vector<8x64xf32>
    %252 = vector.extract_strided_slice %244 {offsets = [0, 128], sizes = [8, 64], strides = [1, 1]} : vector<8x192xf32> to vector<8x64xf32>
    %253 = math.tanh %251 : vector<8x64xf32>
    %254 = arith.mulf %252, %253 : vector<8x64xf32>
    %255 = tpu.concatenate %254, %230 in 1 : vector<8x64xf32>, vector<8x64xf32> -> vector<8x128xf32>
    %cst_51 = arith.constant dense<0.000000e+00> : vector<8x256xf32>
    %256 = tpu.matmul %255, %10, %cst_51 {dimension_numbers = #tpu.dot_dimension_numbers<[1], [0], [0], [1], [0, 0, 1, 1], [], []>} : vector<8x128xf32>, vector<128x256xf32>, vector<8x256xf32> -> vector<8x256xf32>
    %257 = vector.broadcast %11 : vector<1x256xf32> to vector<8x256xf32>
    %258 = arith.addf %256, %257 : vector<8x256xf32>
    %259 = vector.extract_strided_slice %258 {offsets = [0, 0], sizes = [8, 192], strides = [1, 1]} : vector<8x256xf32> to vector<8x192xf32>
    %260 = arith.negf %259 : vector<8x192xf32>
    %261 = math.exp %260 : vector<8x192xf32>
    %cst_52 = arith.constant 1.000000e+00 : f32
    %262 = vector.broadcast %cst_52 : f32 to vector<8x192xf32>
    %263 = arith.addf %262, %261 : vector<8x192xf32>
    %264 = arith.divf %262, %263 : vector<8x192xf32>
    %265 = vector.extract_strided_slice %258 {offsets = [0, 192], sizes = [8, 64], strides = [1, 1]} : vector<8x256xf32> to vector<8x64xf32>
    %266 = math.tanh %265 : vector<8x64xf32>
    %267 = vector.extract_strided_slice %264 {offsets = [0, 64], sizes = [8, 64], strides = [1, 1]} : vector<8x192xf32> to vector<8x64xf32>
    %268 = arith.mulf %267, %227 : vector<8x64xf32>
    %269 = vector.extract_strided_slice %264 {offsets = [0, 0], sizes = [8, 64], strides = [1, 1]} : vector<8x192xf32> to vector<8x64xf32>
    %270 = arith.mulf %269, %266 : vector<8x64xf32>
    %271 = arith.addf %268, %270 : vector<8x64xf32>
    %272 = vector.extract_strided_slice %264 {offsets = [0, 128], sizes = [8, 64], strides = [1, 1]} : vector<8x192xf32> to vector<8x64xf32>
    %273 = math.tanh %271 : vector<8x64xf32>
    %274 = arith.mulf %272, %273 : vector<8x64xf32>
    %275 = arith.index_cast %234 : i32 to index
    %c0_53 = arith.constant 0 : index
    %276 = vector.load %arg10[%275, %c0_53] : memref<64x64xf32, #tpu.memory_space<vmem>>, vector<8x64xf32>
    tpu.vector_store %arg10[%275, %c0_53], %274 {strides = array<i32>} : memref<64x64xf32, #tpu.memory_space<vmem>>, vector<8x64xf32>,
    %c6_i32 = arith.constant 6 : i32
    %c8_i32_54 = arith.constant 8 : i32
    %277 = arith.muli %c6_i32, %c8_i32_54 : i32
    %278 = tpu.assume_multiple %277, 8 : i32
    %279 = arith.index_cast %278 : i32 to index
    %c0_55 = arith.constant 0 : index
    %280 = vector.load %arg9[%279, %c0_55] : memref<64x256xf32, #tpu.memory_space<vmem>>, vector<8x256xf32>
    %cst_56 = arith.constant dense<0.000000e+00> : vector<8x256xf32>
    %281 = tpu.matmul %254, %9, %cst_56 {dimension_numbers = #tpu.dot_dimension_numbers<[1], [0], [0], [1], [0, 0, 1, 1], [], []>} : vector<8x64xf32>, vector<64x256xf32>, vector<8x256xf32> -> vector<8x256xf32>
    %282 = arith.addf %280, %281 : vector<8x256xf32>
    %283 = vector.extract_strided_slice %282 {offsets = [0, 0], sizes = [8, 192], strides = [1, 1]} : vector<8x256xf32> to vector<8x192xf32>
    %284 = arith.negf %283 : vector<8x192xf32>
    %285 = math.exp %284 : vector<8x192xf32>
    %cst_57 = arith.constant 1.000000e+00 : f32
    %286 = vector.broadcast %cst_57 : f32 to vector<8x192xf32>
    %287 = arith.addf %286, %285 : vector<8x192xf32>
    %288 = arith.divf %286, %287 : vector<8x192xf32>
    %289 = vector.extract_strided_slice %282 {offsets = [0, 192], sizes = [8, 64], strides = [1, 1]} : vector<8x256xf32> to vector<8x64xf32>
    %290 = math.tanh %289 : vector<8x64xf32>
    %291 = vector.extract_strided_slice %288 {offsets = [0, 64], sizes = [8, 64], strides = [1, 1]} : vector<8x192xf32> to vector<8x64xf32>
    %292 = arith.mulf %291, %251 : vector<8x64xf32>
    %293 = vector.extract_strided_slice %288 {offsets = [0, 0], sizes = [8, 64], strides = [1, 1]} : vector<8x192xf32> to vector<8x64xf32>
    %294 = arith.mulf %293, %290 : vector<8x64xf32>
    %295 = arith.addf %292, %294 : vector<8x64xf32>
    %296 = vector.extract_strided_slice %288 {offsets = [0, 128], sizes = [8, 64], strides = [1, 1]} : vector<8x192xf32> to vector<8x64xf32>
    %297 = math.tanh %295 : vector<8x64xf32>
    %298 = arith.mulf %296, %297 : vector<8x64xf32>
    %299 = tpu.concatenate %298, %274 in 1 : vector<8x64xf32>, vector<8x64xf32> -> vector<8x128xf32>
    %cst_58 = arith.constant dense<0.000000e+00> : vector<8x256xf32>
    %300 = tpu.matmul %299, %10, %cst_58 {dimension_numbers = #tpu.dot_dimension_numbers<[1], [0], [0], [1], [0, 0, 1, 1], [], []>} : vector<8x128xf32>, vector<128x256xf32>, vector<8x256xf32> -> vector<8x256xf32>
    %301 = vector.broadcast %11 : vector<1x256xf32> to vector<8x256xf32>
    %302 = arith.addf %300, %301 : vector<8x256xf32>
    %303 = vector.extract_strided_slice %302 {offsets = [0, 0], sizes = [8, 192], strides = [1, 1]} : vector<8x256xf32> to vector<8x192xf32>
    %304 = arith.negf %303 : vector<8x192xf32>
    %305 = math.exp %304 : vector<8x192xf32>
    %cst_59 = arith.constant 1.000000e+00 : f32
    %306 = vector.broadcast %cst_59 : f32 to vector<8x192xf32>
    %307 = arith.addf %306, %305 : vector<8x192xf32>
    %308 = arith.divf %306, %307 : vector<8x192xf32>
    %309 = vector.extract_strided_slice %302 {offsets = [0, 192], sizes = [8, 64], strides = [1, 1]} : vector<8x256xf32> to vector<8x64xf32>
    %310 = math.tanh %309 : vector<8x64xf32>
    %311 = vector.extract_strided_slice %308 {offsets = [0, 64], sizes = [8, 64], strides = [1, 1]} : vector<8x192xf32> to vector<8x64xf32>
    %312 = arith.mulf %311, %271 : vector<8x64xf32>
    %313 = vector.extract_strided_slice %308 {offsets = [0, 0], sizes = [8, 64], strides = [1, 1]} : vector<8x192xf32> to vector<8x64xf32>
    %314 = arith.mulf %313, %310 : vector<8x64xf32>
    %315 = arith.addf %312, %314 : vector<8x64xf32>
    %316 = vector.extract_strided_slice %308 {offsets = [0, 128], sizes = [8, 64], strides = [1, 1]} : vector<8x192xf32> to vector<8x64xf32>
    %317 = math.tanh %315 : vector<8x64xf32>
    %318 = arith.mulf %316, %317 : vector<8x64xf32>
    %319 = arith.index_cast %278 : i32 to index
    %c0_60 = arith.constant 0 : index
    %320 = vector.load %arg10[%319, %c0_60] : memref<64x64xf32, #tpu.memory_space<vmem>>, vector<8x64xf32>
    tpu.vector_store %arg10[%319, %c0_60], %318 {strides = array<i32>} : memref<64x64xf32, #tpu.memory_space<vmem>>, vector<8x64xf32>,
    %c7_i32 = arith.constant 7 : i32
    %c8_i32_61 = arith.constant 8 : i32
    %321 = arith.muli %c7_i32, %c8_i32_61 : i32
    %322 = tpu.assume_multiple %321, 8 : i32
    %323 = arith.index_cast %322 : i32 to index
    %c0_62 = arith.constant 0 : index
    %324 = vector.load %arg9[%323, %c0_62] : memref<64x256xf32, #tpu.memory_space<vmem>>, vector<8x256xf32>
    %cst_63 = arith.constant dense<0.000000e+00> : vector<8x256xf32>
    %325 = tpu.matmul %298, %9, %cst_63 {dimension_numbers = #tpu.dot_dimension_numbers<[1], [0], [0], [1], [0, 0, 1, 1], [], []>} : vector<8x64xf32>, vector<64x256xf32>, vector<8x256xf32> -> vector<8x256xf32>
    %326 = arith.addf %324, %325 : vector<8x256xf32>
    %327 = vector.extract_strided_slice %326 {offsets = [0, 0], sizes = [8, 192], strides = [1, 1]} : vector<8x256xf32> to vector<8x192xf32>
    %328 = arith.negf %327 : vector<8x192xf32>
    %329 = math.exp %328 : vector<8x192xf32>
    %cst_64 = arith.constant 1.000000e+00 : f32
    %330 = vector.broadcast %cst_64 : f32 to vector<8x192xf32>
    %331 = arith.addf %330, %329 : vector<8x192xf32>
    %332 = arith.divf %330, %331 : vector<8x192xf32>
    %333 = vector.extract_strided_slice %326 {offsets = [0, 192], sizes = [8, 64], strides = [1, 1]} : vector<8x256xf32> to vector<8x64xf32>
    %334 = math.tanh %333 : vector<8x64xf32>
    %335 = vector.extract_strided_slice %332 {offsets = [0, 64], sizes = [8, 64], strides = [1, 1]} : vector<8x192xf32> to vector<8x64xf32>
    %336 = arith.mulf %335, %295 : vector<8x64xf32>
    %337 = vector.extract_strided_slice %332 {offsets = [0, 0], sizes = [8, 64], strides = [1, 1]} : vector<8x192xf32> to vector<8x64xf32>
    %338 = arith.mulf %337, %334 : vector<8x64xf32>
    %339 = arith.addf %336, %338 : vector<8x64xf32>
    %340 = vector.extract_strided_slice %332 {offsets = [0, 128], sizes = [8, 64], strides = [1, 1]} : vector<8x192xf32> to vector<8x64xf32>
    %341 = math.tanh %339 : vector<8x64xf32>
    %342 = arith.mulf %340, %341 : vector<8x64xf32>
    %343 = tpu.concatenate %342, %318 in 1 : vector<8x64xf32>, vector<8x64xf32> -> vector<8x128xf32>
    %cst_65 = arith.constant dense<0.000000e+00> : vector<8x256xf32>
    %344 = tpu.matmul %343, %10, %cst_65 {dimension_numbers = #tpu.dot_dimension_numbers<[1], [0], [0], [1], [0, 0, 1, 1], [], []>} : vector<8x128xf32>, vector<128x256xf32>, vector<8x256xf32> -> vector<8x256xf32>
    %345 = vector.broadcast %11 : vector<1x256xf32> to vector<8x256xf32>
    %346 = arith.addf %344, %345 : vector<8x256xf32>
    %347 = vector.extract_strided_slice %346 {offsets = [0, 0], sizes = [8, 192], strides = [1, 1]} : vector<8x256xf32> to vector<8x192xf32>
    %348 = arith.negf %347 : vector<8x192xf32>
    %349 = math.exp %348 : vector<8x192xf32>
    %cst_66 = arith.constant 1.000000e+00 : f32
    %350 = vector.broadcast %cst_66 : f32 to vector<8x192xf32>
    %351 = arith.addf %350, %349 : vector<8x192xf32>
    %352 = arith.divf %350, %351 : vector<8x192xf32>
    %353 = vector.extract_strided_slice %346 {offsets = [0, 192], sizes = [8, 64], strides = [1, 1]} : vector<8x256xf32> to vector<8x64xf32>
    %354 = math.tanh %353 : vector<8x64xf32>
    %355 = vector.extract_strided_slice %352 {offsets = [0, 64], sizes = [8, 64], strides = [1, 1]} : vector<8x192xf32> to vector<8x64xf32>
    %356 = arith.mulf %355, %315 : vector<8x64xf32>
    %357 = vector.extract_strided_slice %352 {offsets = [0, 0], sizes = [8, 64], strides = [1, 1]} : vector<8x192xf32> to vector<8x64xf32>
    %358 = arith.mulf %357, %354 : vector<8x64xf32>
    %359 = arith.addf %356, %358 : vector<8x64xf32>
    %360 = vector.extract_strided_slice %352 {offsets = [0, 128], sizes = [8, 64], strides = [1, 1]} : vector<8x192xf32> to vector<8x64xf32>
    %361 = math.tanh %359 : vector<8x64xf32>
    %362 = arith.mulf %360, %361 : vector<8x64xf32>
    %363 = arith.index_cast %322 : i32 to index
    %c0_67 = arith.constant 0 : index
    %364 = vector.load %arg10[%363, %c0_67] : memref<64x64xf32, #tpu.memory_space<vmem>>, vector<8x64xf32>
    tpu.vector_store %arg10[%363, %c0_67], %362 {strides = array<i32>} : memref<64x64xf32, #tpu.memory_space<vmem>>, vector<8x64xf32>,
    %c8_i32_68 = arith.constant 8 : i32
    %c0_69 = arith.constant 0 : index
    %c0_70 = arith.constant 0 : index
    %365 = vector.load %arg10[%c0_69, %c0_70] : memref<64x64xf32, #tpu.memory_space<vmem>>, vector<64x64xf32>
    %c0_71 = arith.constant 0 : index
    %c0_72 = arith.constant 0 : index
    %366 = vector.load %arg6[%c0_71, %c0_72] : memref<64x16xf32, #tpu.memory_space<vmem>>, vector<64x16xf32>
    %cst_73 = arith.constant dense<0.000000e+00> : vector<64x16xf32>
    %367 = tpu.matmul %365, %366, %cst_73 {dimension_numbers = #tpu.dot_dimension_numbers<[1], [0], [0], [1], [0, 0, 1, 1], [], []>} : vector<64x64xf32>, vector<64x16xf32>, vector<64x16xf32> -> vector<64x16xf32>
    %c0_74 = arith.constant 0 : index
    %c0_75 = arith.constant 0 : index
    %368 = vector.load %arg7[%c0_74, %c0_75] : memref<1x16xf32, #tpu.memory_space<vmem>>, vector<1x16xf32>
    %369 = vector.broadcast %368 : vector<1x16xf32> to vector<64x16xf32>
    %370 = arith.addf %367, %369 : vector<64x16xf32>
    %c0_76 = arith.constant 0 : index
    %c0_77 = arith.constant 0 : index
    %371 = vector.load %arg8[%c0_76, %c0_77] : memref<64x16xf32, #tpu.memory_space<vmem>>, vector<64x16xf32>
    tpu.vector_store %arg8[%c0_76, %c0_77], %370 {strides = array<i32>} : memref<64x16xf32, #tpu.memory_space<vmem>>, vector<64x16xf32>,
    return
  }
}

</mosaic_0001>

<llo_original>
// kernel: model_forward.1
$region0: #{model_forward.1}
  #allocation0 [shape = 'u32[]', space=smem, size = 0x4, offset = 0x4, fixed_abs, tag = 'smem constant byte address 0x4 - core index']
  #allocation1 [shape = 'u32[144,128]{1,0:T(1,128)}', space=vmem, size = 0x12000, scoped, tag = 'internal scratch']
  #allocation2 [shape = 'f32[64,256]{1,0:T(8,128)}', space=vmem, size = 0x10000, scoped, tag = 'scratch operand']
  #allocation3 [shape = 'f32[64,64]{1,0:T(8,128)}', space=vmem, size = 0x8000, scoped, tag = 'scratch operand']
  %s0 = inlined_call_operand.vmem [shape: f32[64,1], index: 0, kind: input, shape index: {}]
  %s1 = inlined_call_operand.vmem [shape: f32[1,256], index: 1, kind: input, shape index: {}]
  %s2 = inlined_call_operand.vmem [shape: f32[64,256], index: 2, kind: input, shape index: {}]
  %s3 = inlined_call_operand.vmem [shape: f32[1,256], index: 3, kind: input, shape index: {}]
  %s4 = inlined_call_operand.hbm [shape: f32[128,256], index: 4, kind: input, shape index: {}]
  %s5 = inlined_call_operand.vmem [shape: f32[1,256], index: 5, kind: input, shape index: {}]
  %s6 = inlined_call_operand.vmem [shape: f32[64,16], index: 6, kind: input, shape index: {}]
  %s7 = inlined_call_operand.vmem [shape: f32[1,16], index: 7, kind: input, shape index: {}]
  %s8 = inlined_call_operand.vmem [shape: f32[64,16], index: 8, kind: output, shape index: {}]
  %s9 = sld [smem:[#allocation0]]
  $region46: #{model_forward.1} parent=0
    _
  %s11 = ssub.s32 1, %s9
  %s12 = scalar_select 0, %s11, %s9
  $region1: #{model_forward.1} parent=0
    #allocation4 [shape = 'u8[131072]{0}', space=vmem, size = 0x20000, scoped, tag = 'input window, operand 4, single buffered']
    #allocation5 [shape = 's32[1]{0}', space=sflag, size = 0x4, scoped, tag = 'scoped memory for model_forward.1']
    %13 = vsyncpa [#allocation5], 0
    // Predicated region
    $region2: #{model_forward.1} parent=1 // pred_check
      _
    $region3: #{model_forward.1} parent=1 // pred_check_branch
      %15 = sbr.rel (0) target = $region5
    $region4: #{model_forward.1} parent=1 // pred_region
      _
    $region5: #{model_forward.1} parent=1 // pred_fallthru
      _
    // Predicated region
    $region6: #{model_forward.1} parent=1 // pred_check
      _
    $region7: #{model_forward.1} parent=1 // pred_check_branch
      %17 = sbr.rel (0) target = $region9
    $region8: #{model_forward.1} parent=1 // pred_region
      _
    $region9: #{model_forward.1} parent=1 // pred_fallthru
      _
    // Predicated region
    $region10: #{model_forward.1} parent=1 // pred_check
      _
    $region11: #{model_forward.1} parent=1 // pred_check_branch
      %19 = sbr.rel (0) target = $region13
    $region12: #{model_forward.1} parent=1 // pred_region
      _
    $region13: #{model_forward.1} parent=1 // pred_fallthru
      _
    // Predicated region
    $region14: #{model_forward.1} parent=1 // pred_check
      _
    $region15: #{model_forward.1} parent=1 // pred_check_branch
      %21 = sbr.rel (0) target = $region17
    $region16: #{model_forward.1} parent=1 // pred_region
      _
    $region17: #{model_forward.1} parent=1 // pred_fallthru
      _
    // Predicated region
    $region18: #{model_forward.1} parent=1 // pred_check
      _
    $region19: #{model_forward.1} parent=1 // pred_check_branch
      %23 = sbr.rel (0) target = $region21
    $region20: #{model_forward.1} parent=1 // pred_region
      %s25 = ssub.s32 4096, 4096
      %26 = vsyncadd [#allocation5], %s25
      %s27 = sshll.u32 [#allocation4], 4
      %s28 = int_to_ptr.vmem [resolvable:$true] %s27
      %33 = dma.hbm_to_vmem [thread:$0]  %s4, 4096, %s28, [#allocation5], 256, 256, 16
    $region21: #{model_forward.1} parent=1 // pred_fallthru
      _
    // Predicated region
    $region22: #{model_forward.1} parent=1 // pred_check
      _
    $region23: #{model_forward.1} parent=1 // pred_check_branch
      %35 = sbr.rel (0) target = $region25
    $region24: #{model_forward.1} parent=1 // pred_region
      _
    $region25: #{model_forward.1} parent=1 // pred_fallthru
      _
    // Predicated region
    $region26: #{model_forward.1} parent=1 // pred_check
      _
    $region27: #{model_forward.1} parent=1 // pred_check_branch
      %37 = sbr.rel (0) target = $region29
    $region28: #{model_forward.1} parent=1 // pred_region
      _
    $region29: #{model_forward.1} parent=1 // pred_fallthru
      _
    // Predicated region
    $region30: #{model_forward.1} parent=1 // pred_check
      _
    $region31: #{model_forward.1} parent=1 // pred_check_branch
      %39 = sbr.rel (0) target = $region33
    $region32: #{model_forward.1} parent=1 // pred_region
      _
    $region33: #{model_forward.1} parent=1 // pred_fallthru
      _
    // Predicated region
    $region34: #{model_forward.1} parent=1 // pred_check
      _
    $region35: #{model_forward.1} parent=1 // pred_check_branch
      %41 = sbr.rel (0) target = $region37
    $region36: #{model_forward.1} parent=1 // pred_region
      %42 = dma.done [#allocation5], 4096
    $region37: #{model_forward.1} parent=1 // pred_fallthru
      _
    %v43 = vld [vmem:[%s0] sm:$0xff]
    %v44 = vld [vmem:[%s0 + $0x8] sm:$0xff]
    %v45 = vld [vmem:[%s0 + $0x10] sm:$0xff]
    %v46 = vld [vmem:[%s0 + $0x18] sm:$0xff]
    %v47 = vld [vmem:[%s0 + $0x20] sm:$0xff]
    %v48 = vld [vmem:[%s0 + $0x28] sm:$0xff]
    %v49 = vld [vmem:[%s0 + $0x30] sm:$0xff]
    %v50 = vld [vmem:[%s0 + $0x38] sm:$0xff]
    %v51 = vld [vmem:[%s1] sm:$0x3]
    %53 = vset.pattern.permute.xlu0 0
    %54 = vperm.xlu0 %53, %v43
    %v55 = vpop.permute.xlu0 %54
    %58 = vset.pattern.permute.xlu0 0
    %59 = vperm.xlu0 %58, %v44
    %v60 = vpop.permute.xlu0 %59
    %63 = vset.pattern.permute.xlu0 0
    %64 = vperm.xlu0 %63, %v45
    %v65 = vpop.permute.xlu0 %64
    %68 = vset.pattern.permute.xlu0 0
    %69 = vperm.xlu0 %68, %v46
    %v70 = vpop.permute.xlu0 %69
    %73 = vset.pattern.permute.xlu0 0
    %74 = vperm.xlu0 %73, %v47
    %v75 = vpop.permute.xlu0 %74
    %78 = vset.pattern.permute.xlu0 0
    %79 = vperm.xlu0 %78, %v48
    %v80 = vpop.permute.xlu0 %79
    %83 = vset.pattern.permute.xlu0 0
    %84 = vperm.xlu0 %83, %v49
    %v85 = vpop.permute.xlu0 %84
    %88 = vset.pattern.permute.xlu0 0
    %89 = vperm.xlu0 %88, %v50
    %v90 = vpop.permute.xlu0 %89
    %v93 = vlaneseq
    %v94 = vshrl.u32 %v93, 7
    %v95 = vsub.s32 0, %v94
    %v96 = vrot.slane %v51, %v95
    %v97 = vlaneseq
    %v98 = vshrl.u32 %v97, 7
    %v99 = vsub.s32 1, %v98
    %v100 = vrot.slane %v51, %v99
    %v103 = vmul.f32 %v55, %v96
    %v104 = vmul.f32 %v55, %v100
    %v105 = vmul.f32 %v60, %v96
    %v106 = vmul.f32 %v60, %v100
    %v107 = vmul.f32 %v65, %v96
    %v108 = vmul.f32 %v65, %v100
    %v109 = vmul.f32 %v70, %v96
    %v110 = vmul.f32 %v70, %v100
    %v111 = vmul.f32 %v75, %v96
    %v112 = vmul.f32 %v75, %v100
    %v113 = vmul.f32 %v80, %v96
    %v114 = vmul.f32 %v80, %v100
    %v115 = vmul.f32 %v85, %v96
    %v116 = vmul.f32 %v85, %v100
    %v117 = vmul.f32 %v90, %v96
    %v118 = vmul.f32 %v90, %v100
    %v119 = vld [vmem:[%s3] sm:$0x3]
    %v121 = vlaneseq
    %v122 = vshrl.u32 %v121, 7
    %v123 = vsub.s32 0, %v122
    %v124 = vrot.slane %v119, %v123
    %v125 = vlaneseq
    %v126 = vshrl.u32 %v125, 7
    %v127 = vsub.s32 1, %v126
    %v128 = vrot.slane %v119, %v127
    %v131 = vadd.f32 %v103, %v124
    %v132 = vadd.f32 %v104, %v128
    %v133 = vadd.f32 %v105, %v124
    %v134 = vadd.f32 %v106, %v128
    %v135 = vadd.f32 %v107, %v124
    %v136 = vadd.f32 %v108, %v128
    %v137 = vadd.f32 %v109, %v124
    %v138 = vadd.f32 %v110, %v128
    %v139 = vadd.f32 %v111, %v124
    %v140 = vadd.f32 %v112, %v128
    %v141 = vadd.f32 %v113, %v124
    %v142 = vadd.f32 %v114, %v128
    %v143 = vadd.f32 %v115, %v124
    %v144 = vadd.f32 %v116, %v128
    %v145 = vadd.f32 %v117, %v124
    %v146 = vadd.f32 %v118, %v128
    %147 = vst [vmem:[#allocation2] sm:$0xff] %v131
    %148 = vst [vmem:[#allocation2 + $0x8] sm:$0xff] %v132
    %149 = vst [vmem:[#allocation2 + $0x10] sm:$0xff] %v133
    %150 = vst [vmem:[#allocation2 + $0x18] sm:$0xff] %v134
    %151 = vst [vmem:[#allocation2 + $0x20] sm:$0xff] %v135
    %152 = vst [vmem:[#allocation2 + $0x28] sm:$0xff] %v136
    %153 = vst [vmem:[#allocation2 + $0x30] sm:$0xff] %v137
    %154 = vst [vmem:[#allocation2 + $0x38] sm:$0xff] %v138
    %155 = vst [vmem:[#allocation2 + $0x40] sm:$0xff] %v139
    %156 = vst [vmem:[#allocation2 + $0x48] sm:$0xff] %v140
    %157 = vst [vmem:[#allocation2 + $0x50] sm:$0xff] %v141
    %158 = vst [vmem:[#allocation2 + $0x58] sm:$0xff] %v142
    %159 = vst [vmem:[#allocation2 + $0x60] sm:$0xff] %v143
    %160 = vst [vmem:[#allocation2 + $0x68] sm:$0xff] %v144
    %161 = vst [vmem:[#allocation2 + $0x70] sm:$0xff] %v145
    %162 = vst [vmem:[#allocation2 + $0x78] sm:$0xff] %v146
    %v163 = vld [vmem:[%s2] sm:$0xff]
    %v164 = vld [vmem:[%s2 + $0x8] sm:$0xff]
    %v165 = vld [vmem:[%s2 + $0x10] sm:$0xff]
    %v166 = vld [vmem:[%s2 + $0x18] sm:$0xff]
    %v167 = vld [vmem:[%s2 + $0x20] sm:$0xff]
    %v168 = vld [vmem:[%s2 + $0x28] sm:$0xff]
    %v169 = vld [vmem:[%s2 + $0x30] sm:$0xff]
    %v170 = vld [vmem:[%s2 + $0x38] sm:$0xff]
    %v171 = vld [vmem:[%s2 + $0x40] sm:$0xff]
    %v172 = vld [vmem:[%s2 + $0x48] sm:$0xff]
    %v173 = vld [vmem:[%s2 + $0x50] sm:$0xff]
    %v174 = vld [vmem:[%s2 + $0x58] sm:$0xff]
    %v175 = vld [vmem:[%s2 + $0x60] sm:$0xff]
    %v176 = vld [vmem:[%s2 + $0x68] sm:$0xff]
    %v177 = vld [vmem:[%s2 + $0x70] sm:$0xff]
    %v178 = vld [vmem:[%s2 + $0x78] sm:$0xff]
    %v179 = vld [vmem:[#allocation4] sm:$0xff]
    %v180 = vld [vmem:[#allocation4 + $0x8] sm:$0xff]
    %v181 = vld [vmem:[#allocation4 + $0x10] sm:$0xff]
    %v182 = vld [vmem:[#allocation4 + $0x18] sm:$0xff]
    %v183 = vld [vmem:[#allocation4 + $0x20] sm:$0xff]
    %v184 = vld [vmem:[#allocation4 + $0x28] sm:$0xff]
    %v185 = vld [vmem:[#allocation4 + $0x30] sm:$0xff]
    %v186 = vld [vmem:[#allocation4 + $0x38] sm:$0xff]
    %v187 = vld [vmem:[#allocation4 + $0x40] sm:$0xff]
    %v188 = vld [vmem:[#allocation4 + $0x48] sm:$0xff]
    %v189 = vld [vmem:[#allocation4 + $0x50] sm:$0xff]
    %v190 = vld [vmem:[#allocation4 + $0x58] sm:$0xff]
    %v191 = vld [vmem:[#allocation4 + $0x60] sm:$0xff]
    %v192 = vld [vmem:[#allocation4 + $0x68] sm:$0xff]
    %v193 = vld [vmem:[#allocation4 + $0x70] sm:$0xff]
    %v194 = vld [vmem:[#allocation4 + $0x78] sm:$0xff]
    %v195 = vld [vmem:[#allocation4 + $0x80] sm:$0xff]
    %v196 = vld [vmem:[#allocation4 + $0x88] sm:$0xff]
    %v197 = vld [vmem:[#allocation4 + $0x90] sm:$0xff]
    %v198 = vld [vmem:[#allocation4 + $0x98] sm:$0xff]
    %v199 = vld [vmem:[#allocation4 + $0xa0] sm:$0xff]
    %v200 = vld [vmem:[#allocation4 + $0xa8] sm:$0xff]
    %v201 = vld [vmem:[#allocation4 + $0xb0] sm:$0xff]
    %v202 = vld [vmem:[#allocation4 + $0xb8] sm:$0xff]
    %v203 = vld [vmem:[#allocation4 + $0xc0] sm:$0xff]
    %v204 = vld [vmem:[#allocation4 + $0xc8] sm:$0xff]
    %v205 = vld [vmem:[#allocation4 + $0xd0] sm:$0xff]
    %v206 = vld [vmem:[#allocation4 + $0xd8] sm:$0xff]
    %v207 = vld [vmem:[#allocation4 + $0xe0] sm:$0xff]
    %v208 = vld [vmem:[#allocation4 + $0xe8] sm:$0xff]
    %v209 = vld [vmem:[#allocation4 + $0xf0] sm:$0xff]
    %v210 = vld [vmem:[#allocation4 + $0xf8] sm:$0xff]
    %v211 = vld [vmem:[%s5] sm:$0x3]
    %s212 = smul.u32 0, 2
    %s213 = smul.addr %s212, 8
    %s214 = scalar_lea.vmem [#allocation2], %s213
    %v215 = vld [vmem:[%s214] sm:$0xff]
    %v216 = vld [vmem:[%s214 + $0x8] sm:$0xff]
    %vm217 = vcmask 523264
    %v219 = vsel %vm217, 0.0, 0
    %221 = vmatprep.subr.mxu0 %v164
    %222 = vmatpush1.msra.mxu0 %v163
    %223 = vmatprep.subr.mxu0 %v166
    %224 = vmatpush1.msra.mxu0 %v165
    %225 = vmatprep.subr.mxu0 %v168
    %226 = vmatpush1.msra.mxu0 %v167
    %227 = vmatprep.subr.mxu0 %v170
    %228 = vmatpush1.msra.mxu0 %v169
    %229 = vmatprep.subr.mxu0 %v172
    %230 = vmatpush1.msra.mxu0 %v171
    %231 = vmatprep.subr.mxu0 %v174
    %232 = vmatpush1.msra.mxu0 %v173
    %233 = vmatprep.subr.mxu0 %v176
    %234 = vmatpush1.msra.mxu0 %v175
    %235 = vmatprep.subr.mxu0 %v178
    %236 = vmatpush1.msra.mxu0 %v177
    %237 = vmatprep.subr.mxu0 0.0
    %238 = vmatpush1.msra.mxu0 0.0
    %239 = vmatprep.subr.mxu0 0.0
    %240 = vmatpush1.msra.mxu0 0.0
    %241 = vmatprep.subr.mxu0 0.0
    %242 = vmatpush1.msra.mxu0 0.0
    %243 = vmatprep.subr.mxu0 0.0
    %244 = vmatpush1.msra.mxu0 0.0
    %245 = vmatprep.subr.mxu0 0.0
    %246 = vmatpush1.msra.mxu0 0.0
    %247 = vmatprep.subr.mxu0 0.0
    %248 = vmatpush1.msra.mxu0 0.0
    %249 = vmatprep.subr.mxu0 0.0
    %250 = vmatpush1.msra.mxu0 0.0
    %251 = vmatprep.subr.mxu0 0.0
    %252 = vmatpush1.msra.mxu0 0.0
    %253 = vmatprep.subr.mxu0 0.0
    %254 = vmatpush1.msra.mxu0 0.0
    %255 = vmatprep.subr.mxu0 0.0
    %256 = vmatpush1.msra.mxu0 0.0
    %257 = vmatprep.subr.mxu0 0.0
    %258 = vmatpush1.msra.mxu0 0.0
    %259 = vmatprep.subr.mxu0 0.0
    %260 = vmatpush1.msra.mxu0 0.0
    %261 = vmatprep.subr.mxu0 0.0
    %262 = vmatpush1.msra.mxu0 0.0
    %263 = vmatprep.subr.mxu0 0.0
    %264 = vmatpush1.msra.mxu0 0.0
    %265 = vmatprep.subr.mxu0 0.0
    %266 = vmatpush1.msra.mxu0 0.0
    %267 = vmatprep.subr.mxu0 0.0
    %268 = vmatpush1.msra.mxu0 0.0
    %269 = vmatprep.subr.mxu0 0.0
    %270 = vmatpush1.msra.mxu0 0.0
    %271 = vmatprep.subr.mxu0 0.0
    %272 = vmatpush1.msra.mxu0 0.0
    %273 = vmatprep.subr.mxu0 0.0
    %274 = vmatpush1.msra.mxu0 0.0
    %275 = vmatprep.subr.mxu0 0.0
    %276 = vmatpush1.msra.mxu0 0.0
    %277 = vmatprep.subr.mxu0 0.0
    %278 = vmatpush1.msra.mxu0 0.0
    %279 = vmatprep.subr.mxu0 0.0
    %280 = vmatpush1.msra.mxu0 0.0
    %281 = vmatprep.subr.mxu0 0.0
    %282 = vmatpush1.msra.mxu0 0.0
    %283 = vmatprep.subr.mxu0 0.0
    %284 = vmatpush1.msra.mxu0 0.0
    %285 = vmatprep.mubr.f32.mxu0 0.0
    %286 = vmatmul.mubr.f32.gmra.mrb[0].mxu0 %v219
    %v287 = vpop.f32.mrb[0].mxu0
    %v288 = vadd.f32 0.0, %v287
    %v289 = vpop.f32.mrb[0].mxu0
    %v290 = vadd.f32 0.0, %v289
    %291 = vdwg.mxu0
    %v292 = vadd.f32 %v215, %v288
    %v293 = vadd.f32 %v216, %v290
    %v294 = vxor.u32 %v292, 2147483648
    %v295 = vxor.u32 %v293, 2147483648
    %v296 = vmul.f32 %v294, 1.442695
    %v297 = vpow.pop %v296
    %v298 = vmul.f32 %v295, 1.442695
    %v299 = vpow.pop %v298
    %v300 = vadd.f32 %v297, 1.0
    %v301 = vadd.f32 %v299, 1.0
    %v302 = vrcp.pop %v300
    %v303 = vmul.f32 1.0, %v302
    %v304 = vrcp.pop %v301
    %v305 = vmul.f32 1.0, %v304
    %v306 = vtanh.pop %v293
    %v307 = vmul.f32 %v303, 0.0
    %309 = vrot.lane.b32.xlu0 %v306, 64
    %v310 = vpop.permute.xlu0 %309
    %v312 = vmul.f32 %v303, %v310
    %314 = vrot.lane.b32.xlu0 %v312, 64
    %v315 = vpop.permute.xlu0 %314
    %v317 = vadd.f32 %v307, %v315
    %v318 = vtanh.pop %v317
    %320 = vrot.lane.b32.xlu0 %v318, 64
    %v321 = vpop.permute.xlu0 %320
    %v323 = vmul.f32 %v305, %v321
    %v324 = vsel %vm217, %v323, 0.0
    %v326 = vlaneseq
    %v327 = vshrl.u32 %v326, 7
    %v328 = vsub.s32 0, %v327
    %v329 = vrot.slane %v211, %v328
    %v330 = vlaneseq
    %v331 = vshrl.u32 %v330, 7
    %v332 = vsub.s32 1, %v331
    %v333 = vrot.slane %v211, %v332
    %336 = vmatprep.subr.mxu0 %v180
    %337 = vmatpush1.msra.mxu0 %v179
    %338 = vmatprep.subr.mxu0 %v182
    %339 = vmatpush1.msra.mxu0 %v181
    %340 = vmatprep.subr.mxu0 %v184
    %341 = vmatpush1.msra.mxu0 %v183
    %342 = vmatprep.subr.mxu0 %v186
    %343 = vmatpush1.msra.mxu0 %v185
    %344 = vmatprep.subr.mxu0 %v188
    %345 = vmatpush1.msra.mxu0 %v187
    %346 = vmatprep.subr.mxu0 %v190
    %347 = vmatpush1.msra.mxu0 %v189
    %348 = vmatprep.subr.mxu0 %v192
    %349 = vmatpush1.msra.mxu0 %v191
    %350 = vmatprep.subr.mxu0 %v194
    %351 = vmatpush1.msra.mxu0 %v193
    %352 = vmatprep.subr.mxu0 %v196
    %353 = vmatpush1.msra.mxu0 %v195
    %354 = vmatprep.subr.mxu0 %v198
    %355 = vmatpush1.msra.mxu0 %v197
    %356 = vmatprep.subr.mxu0 %v200
    %357 = vmatpush1.msra.mxu0 %v199
    %358 = vmatprep.subr.mxu0 %v202
    %359 = vmatpush1.msra.mxu0 %v201
    %360 = vmatprep.subr.mxu0 %v204
    %361 = vmatpush1.msra.mxu0 %v203
    %362 = vmatprep.subr.mxu0 %v206
    %363 = vmatpush1.msra.mxu0 %v205
    %364 = vmatprep.subr.mxu0 %v208
    %365 = vmatpush1.msra.mxu0 %v207
    %366 = vmatprep.subr.mxu0 %v210
    %367 = vmatpush1.msra.mxu0 %v209
    %368 = vmatprep.subr.mxu0 0.0
    %369 = vmatpush1.msra.mxu0 0.0
    %370 = vmatprep.subr.mxu0 0.0
    %371 = vmatpush1.msra.mxu0 0.0
    %372 = vmatprep.subr.mxu0 0.0
    %373 = vmatpush1.msra.mxu0 0.0
    %374 = vmatprep.subr.mxu0 0.0
    %375 = vmatpush1.msra.mxu0 0.0
    %376 = vmatprep.subr.mxu0 0.0
    %377 = vmatpush1.msra.mxu0 0.0
    %378 = vmatprep.subr.mxu0 0.0
    %379 = vmatpush1.msra.mxu0 0.0
    %380 = vmatprep.subr.mxu0 0.0
    %381 = vmatpush1.msra.mxu0 0.0
    %382 = vmatprep.subr.mxu0 0.0
    %383 = vmatpush1.msra.mxu0 0.0
    %384 = vmatprep.subr.mxu0 0.0
    %385 = vmatpush1.msra.mxu0 0.0
    %386 = vmatprep.subr.mxu0 0.0
    %387 = vmatpush1.msra.mxu0 0.0
    %388 = vmatprep.subr.mxu0 0.0
    %389 = vmatpush1.msra.mxu0 0.0
    %390 = vmatprep.subr.mxu0 0.0
    %391 = vmatpush1.msra.mxu0 0.0
    %392 = vmatprep.subr.mxu0 0.0
    %393 = vmatpush1.msra.mxu0 0.0
    %394 = vmatprep.subr.mxu0 0.0
    %395 = vmatpush1.msra.mxu0 0.0
    %396 = vmatprep.subr.mxu0 0.0
    %397 = vmatpush1.msra.mxu0 0.0
    %398 = vmatprep.subr.mxu0 0.0
    %399 = vmatpush1.msra.mxu0 0.0
    %400 = vmatprep.mubr.f32.mxu0 0.0
    %401 = vmatmul.mubr.f32.gmra.mrb[0].mxu0 %v324
    %v402 = vpop.f32.mrb[0].mxu0
    %v403 = vadd.f32 %v329, %v402
    %v404 = vpop.f32.mrb[0].mxu0
    %v405 = vadd.f32 %v333, %v404
    %406 = vdwg.mxu0
    %v407 = vxor.u32 %v403, 2147483648
    %v408 = vxor.u32 %v405, 2147483648
    %v409 = vmul.f32 %v407, 1.442695
    %v410 = vpow.pop %v409
    %v411 = vmul.f32 %v408, 1.442695
    %v412 = vpow.pop %v411
    %v413 = vadd.f32 %v410, 1.0
    %v414 = vadd.f32 %v412, 1.0
    %v415 = vrcp.pop %v413
    %v416 = vmul.f32 1.0, %v415
    %v417 = vrcp.pop %v414
    %v418 = vmul.f32 1.0, %v417
    %v419 = vtanh.pop %v405
    %v420 = vmul.f32 %v416, 0.0
    %422 = vrot.lane.b32.xlu0 %v419, 64
    %v423 = vpop.permute.xlu0 %422
    %v425 = vmul.f32 %v416, %v423
    %427 = vrot.lane.b32.xlu0 %v425, 64
    %v428 = vpop.permute.xlu0 %427
    %v430 = vadd.f32 %v420, %v428
    %v431 = vtanh.pop %v430
    %433 = vrot.lane.b32.xlu0 %v431, 64
    %v434 = vpop.permute.xlu0 %433
    %v436 = vmul.f32 %v418, %v434
    %437 = vst.msk [vmem:[#allocation3] sm:$0xff] %vm217, %v436
    %s438 = smul.u32 1, 2
    %s439 = smul.addr %s438, 8
    %s440 = scalar_lea.vmem [#allocation2], %s439
    %v441 = vld [vmem:[%s440] sm:$0xff]
    %v442 = vld [vmem:[%s440 + $0x8] sm:$0xff]
    %v444 = vsel %vm217, %v323, 0
    %446 = vmatprep.subr.mxu0 %v164
    %447 = vmatpush1.msra.mxu0 %v163
    %448 = vmatprep.subr.mxu0 %v166
    %449 = vmatpush1.msra.mxu0 %v165
    %450 = vmatprep.subr.mxu0 %v168
    %451 = vmatpush1.msra.mxu0 %v167
    %452 = vmatprep.subr.mxu0 %v170
    %453 = vmatpush1.msra.mxu0 %v169
    %454 = vmatprep.subr.mxu0 %v172
    %455 = vmatpush1.msra.mxu0 %v171
    %456 = vmatprep.subr.mxu0 %v174
    %457 = vmatpush1.msra.mxu0 %v173
    %458 = vmatprep.subr.mxu0 %v176
    %459 = vmatpush1.msra.mxu0 %v175
    %460 = vmatprep.subr.mxu0 %v178
    %461 = vmatpush1.msra.mxu0 %v177
    %462 = vmatprep.subr.mxu0 0.0
    %463 = vmatpush1.msra.mxu0 0.0
    %464 = vmatprep.subr.mxu0 0.0
    %465 = vmatpush1.msra.mxu0 0.0
    %466 = vmatprep.subr.mxu0 0.0
    %467 = vmatpush1.msra.mxu0 0.0
    %468 = vmatprep.subr.mxu0 0.0
    %469 = vmatpush1.msra.mxu0 0.0
    %470 = vmatprep.subr.mxu0 0.0
    %471 = vmatpush1.msra.mxu0 0.0
    %472 = vmatprep.subr.mxu0 0.0
    %473 = vmatpush1.msra.mxu0 0.0
    %474 = vmatprep.subr.mxu0 0.0
    %475 = vmatpush1.msra.mxu0 0.0
    %476 = vmatprep.subr.mxu0 0.0
    %477 = vmatpush1.msra.mxu0 0.0
    %478 = vmatprep.subr.mxu0 0.0
    %479 = vmatpush1.msra.mxu0 0.0
    %480 = vmatprep.subr.mxu0 0.0
    %481 = vmatpush1.msra.mxu0 0.0
    %482 = vmatprep.subr.mxu0 0.0
    %483 = vmatpush1.msra.mxu0 0.0
    %484 = vmatprep.subr.mxu0 0.0
    %485 = vmatpush1.msra.mxu0 0.0
    %486 = vmatprep.subr.mxu0 0.0
    %487 = vmatpush1.msra.mxu0 0.0
    %488 = vmatprep.subr.mxu0 0.0
    %489 = vmatpush1.msra.mxu0 0.0
    %490 = vmatprep.subr.mxu0 0.0
    %491 = vmatpush1.msra.mxu0 0.0
    %492 = vmatprep.subr.mxu0 0.0
    %493 = vmatpush1.msra.mxu0 0.0
    %494 = vmatprep.subr.mxu0 0.0
    %495 = vmatpush1.msra.mxu0 0.0
    %496 = vmatprep.subr.mxu0 0.0
    %497 = vmatpush1.msra.mxu0 0.0
    %498 = vmatprep.subr.mxu0 0.0
    %499 = vmatpush1.msra.mxu0 0.0
    %500 = vmatprep.subr.mxu0 0.0
    %501 = vmatpush1.msra.mxu0 0.0
    %502 = vmatprep.subr.mxu0 0.0
    %503 = vmatpush1.msra.mxu0 0.0
    %504 = vmatprep.subr.mxu0 0.0
    %505 = vmatpush1.msra.mxu0 0.0
    %506 = vmatprep.subr.mxu0 0.0
    %507 = vmatpush1.msra.mxu0 0.0
    %508 = vmatprep.subr.mxu0 0.0
    %509 = vmatpush1.msra.mxu0 0.0
    %510 = vmatprep.mubr.f32.mxu0 0.0
    %511 = vmatmul.mubr.f32.gmra.mrb[0].mxu0 %v444
    %v512 = vpop.f32.mrb[0].mxu0
    %v513 = vadd.f32 0.0, %v512
    %v514 = vpop.f32.mrb[0].mxu0
    %v515 = vadd.f32 0.0, %v514
    %516 = vdwg.mxu0
    %v517 = vadd.f32 %v441, %v513
    %v518 = vadd.f32 %v442, %v515
    %v519 = vxor.u32 %v517, 2147483648
    %v520 = vxor.u32 %v518, 2147483648
    %v521 = vmul.f32 %v519, 1.442695
    %v522 = vpow.pop %v521
    %v523 = vmul.f32 %v520, 1.442695
    %v524 = vpow.pop %v523
    %v525 = vadd.f32 %v522, 1.0
    %v526 = vadd.f32 %v524, 1.0
    %v527 = vrcp.pop %v525
    %v528 = vmul.f32 1.0, %v527
    %v529 = vrcp.pop %v526
    %v530 = vmul.f32 1.0, %v529
    %v531 = vtanh.pop %v518
    %v532 = vmul.f32 %v528, %v317
    %534 = vrot.lane.b32.xlu0 %v531, 64
    %v535 = vpop.permute.xlu0 %534
    %v537 = vmul.f32 %v528, %v535
    %539 = vrot.lane.b32.xlu0 %v537, 64
    %v540 = vpop.permute.xlu0 %539
    %v542 = vadd.f32 %v532, %v540
    %v543 = vtanh.pop %v542
    %545 = vrot.lane.b32.xlu0 %v543, 64
    %v546 = vpop.permute.xlu0 %545
    %v548 = vmul.f32 %v530, %v546
    %550 = vrot.lane.b32.xlu0 %v436, 64
    %v551 = vpop.permute.xlu0 %550
    %v553 = vsel %vm217, %v548, %v551
    %554 = vmatprep.subr.mxu0 %v180
    %555 = vmatpush1.msra.mxu0 %v179
    %556 = vmatprep.subr.mxu0 %v182
    %557 = vmatpush1.msra.mxu0 %v181
    %558 = vmatprep.subr.mxu0 %v184
    %559 = vmatpush1.msra.mxu0 %v183
    %560 = vmatprep.subr.mxu0 %v186
    %561 = vmatpush1.msra.mxu0 %v185
    %562 = vmatprep.subr.mxu0 %v188
    %563 = vmatpush1.msra.mxu0 %v187
    %564 = vmatprep.subr.mxu0 %v190
    %565 = vmatpush1.msra.mxu0 %v189
    %566 = vmatprep.subr.mxu0 %v192
    %567 = vmatpush1.msra.mxu0 %v191
    %568 = vmatprep.subr.mxu0 %v194
    %569 = vmatpush1.msra.mxu0 %v193
    %570 = vmatprep.subr.mxu0 %v196
    %571 = vmatpush1.msra.mxu0 %v195
    %572 = vmatprep.subr.mxu0 %v198
    %573 = vmatpush1.msra.mxu0 %v197
    %574 = vmatprep.subr.mxu0 %v200
    %575 = vmatpush1.msra.mxu0 %v199
    %576 = vmatprep.subr.mxu0 %v202
    %577 = vmatpush1.msra.mxu0 %v201
    %578 = vmatprep.subr.mxu0 %v204
    %579 = vmatpush1.msra.mxu0 %v203
    %580 = vmatprep.subr.mxu0 %v206
    %581 = vmatpush1.msra.mxu0 %v205
    %582 = vmatprep.subr.mxu0 %v208
    %583 = vmatpush1.msra.mxu0 %v207
    %584 = vmatprep.subr.mxu0 %v210
    %585 = vmatpush1.msra.mxu0 %v209
    %586 = vmatprep.subr.mxu0 0.0
    %587 = vmatpush1.msra.mxu0 0.0
    %588 = vmatprep.subr.mxu0 0.0
    %589 = vmatpush1.msra.mxu0 0.0
    %590 = vmatprep.subr.mxu0 0.0
    %591 = vmatpush1.msra.mxu0 0.0
    %592 = vmatprep.subr.mxu0 0.0
    %593 = vmatpush1.msra.mxu0 0.0
    %594 = vmatprep.subr.mxu0 0.0
    %595 = vmatpush1.msra.mxu0 0.0
    %596 = vmatprep.subr.mxu0 0.0
    %597 = vmatpush1.msra.mxu0 0.0
    %598 = vmatprep.subr.mxu0 0.0
    %599 = vmatpush1.msra.mxu0 0.0
    %600 = vmatprep.subr.mxu0 0.0
    %601 = vmatpush1.msra.mxu0 0.0
    %602 = vmatprep.subr.mxu0 0.0
    %603 = vmatpush1.msra.mxu0 0.0
    %604 = vmatprep.subr.mxu0 0.0
    %605 = vmatpush1.msra.mxu0 0.0
    %606 = vmatprep.subr.mxu0 0.0
    %607 = vmatpush1.msra.mxu0 0.0
    %608 = vmatprep.subr.mxu0 0.0
    %609 = vmatpush1.msra.mxu0 0.0
    %610 = vmatprep.subr.mxu0 0.0
    %611 = vmatpush1.msra.mxu0 0.0
    %612 = vmatprep.subr.mxu0 0.0
    %613 = vmatpush1.msra.mxu0 0.0
    %614 = vmatprep.subr.mxu0 0.0
    %615 = vmatpush1.msra.mxu0 0.0
    %616 = vmatprep.subr.mxu0 0.0
    %617 = vmatpush1.msra.mxu0 0.0
    %618 = vmatprep.mubr.f32.mxu0 0.0
    %619 = vmatmul.mubr.f32.gmra.mrb[0].mxu0 %v553
    %v620 = vpop.f32.mrb[0].mxu0
    %v621 = vadd.f32 %v329, %v620
    %v622 = vpop.f32.mrb[0].mxu0
    %v623 = vadd.f32 %v333, %v622
    %624 = vdwg.mxu0
    %v625 = vxor.u32 %v621, 2147483648
    %v626 = vxor.u32 %v623, 2147483648
    %v627 = vmul.f32 %v625, 1.442695
    %v628 = vpow.pop %v627
    %v629 = vmul.f32 %v626, 1.442695
    %v630 = vpow.pop %v629
    %v631 = vadd.f32 %v628, 1.0
    %v632 = vadd.f32 %v630, 1.0
    %v633 = vrcp.pop %v631
    %v634 = vmul.f32 1.0, %v633
    %v635 = vrcp.pop %v632
    %v636 = vmul.f32 1.0, %v635
    %v637 = vtanh.pop %v623
    %v638 = vmul.f32 %v634, %v430
    %640 = vrot.lane.b32.xlu0 %v637, 64
    %v641 = vpop.permute.xlu0 %640
    %v643 = vmul.f32 %v634, %v641
    %645 = vrot.lane.b32.xlu0 %v643, 64
    %v646 = vpop.permute.xlu0 %645
    %v648 = vadd.f32 %v638, %v646
    %v649 = vtanh.pop %v648
    %651 = vrot.lane.b32.xlu0 %v649, 64
    %v652 = vpop.permute.xlu0 %651
    %v654 = vmul.f32 %v636, %v652
    %s655 = scalar_lea.vmem [#allocation3], 8
    %656 = vst.msk [vmem:[%s655] sm:$0xff] %vm217, %v654
    %s657 = smul.u32 2, 2
    %s658 = smul.addr %s657, 8
    %s659 = scalar_lea.vmem [#allocation2], %s658
    %v660 = vld [vmem:[%s659] sm:$0xff]
    %v661 = vld [vmem:[%s659 + $0x8] sm:$0xff]
    %v663 = vsel %vm217, %v548, 0
    %665 = vmatprep.subr.mxu0 %v164
    %666 = vmatpush1.msra.mxu0 %v163
    %667 = vmatprep.subr.mxu0 %v166
    %668 = vmatpush1.msra.mxu0 %v165
    %669 = vmatprep.subr.mxu0 %v168
    %670 = vmatpush1.msra.mxu0 %v167
    %671 = vmatprep.subr.mxu0 %v170
    %672 = vmatpush1.msra.mxu0 %v169
    %673 = vmatprep.subr.mxu0 %v172
    %674 = vmatpush1.msra.mxu0 %v171
    %675 = vmatprep.subr.mxu0 %v174
    %676 = vmatpush1.msra.mxu0 %v173
    %677 = vmatprep.subr.mxu0 %v176
    %678 = vmatpush1.msra.mxu0 %v175
    %679 = vmatprep.subr.mxu0 %v178
    %680 = vmatpush1.msra.mxu0 %v177
    %681 = vmatprep.subr.mxu0 0.0
    %682 = vmatpush1.msra.mxu0 0.0
    %683 = vmatprep.subr.mxu0 0.0
    %684 = vmatpush1.msra.mxu0 0.0
    %685 = vmatprep.subr.mxu0 0.0
    %686 = vmatpush1.msra.mxu0 0.0
    %687 = vmatprep.subr.mxu0 0.0
    %688 = vmatpush1.msra.mxu0 0.0
    %689 = vmatprep.subr.mxu0 0.0
    %690 = vmatpush1.msra.mxu0 0.0
    %691 = vmatprep.subr.mxu0 0.0
    %692 = vmatpush1.msra.mxu0 0.0
    %693 = vmatprep.subr.mxu0 0.0
    %694 = vmatpush1.msra.mxu0 0.0
    %695 = vmatprep.subr.mxu0 0.0
    %696 = vmatpush1.msra.mxu0 0.0
    %697 = vmatprep.subr.mxu0 0.0
    %698 = vmatpush1.msra.mxu0 0.0
    %699 = vmatprep.subr.mxu0 0.0
    %700 = vmatpush1.msra.mxu0 0.0
    %701 = vmatprep.subr.mxu0 0.0
    %702 = vmatpush1.msra.mxu0 0.0
    %703 = vmatprep.subr.mxu0 0.0
    %704 = vmatpush1.msra.mxu0 0.0
    %705 = vmatprep.subr.mxu0 0.0
    %706 = vmatpush1.msra.mxu0 0.0
    %707 = vmatprep.subr.mxu0 0.0
    %708 = vmatpush1.msra.mxu0 0.0
    %709 = vmatprep.subr.mxu0 0.0
    %710 = vmatpush1.msra.mxu0 0.0
    %711 = vmatprep.subr.mxu0 0.0
    %712 = vmatpush1.msra.mxu0 0.0
    %713 = vmatprep.subr.mxu0 0.0
    %714 = vmatpush1.msra.mxu0 0.0
    %715 = vmatprep.subr.mxu0 0.0
    %716 = vmatpush1.msra.mxu0 0.0
    %717 = vmatprep.subr.mxu0 0.0
    %718 = vmatpush1.msra.mxu0 0.0
    %719 = vmatprep.subr.mxu0 0.0
    %720 = vmatpush1.msra.mxu0 0.0
    %721 = vmatprep.subr.mxu0 0.0
    %722 = vmatpush1.msra.mxu0 0.0
    %723 = vmatprep.subr.mxu0 0.0
    %724 = vmatpush1.msra.mxu0 0.0
    %725 = vmatprep.subr.mxu0 0.0
    %726 = vmatpush1.msra.mxu0 0.0
    %727 = vmatprep.subr.mxu0 0.0
    %728 = vmatpush1.msra.mxu0 0.0
    %729 = vmatprep.mubr.f32.mxu0 0.0
    %730 = vmatmul.mubr.f32.gmra.mrb[0].mxu0 %v663
    %v731 = vpop.f32.mrb[0].mxu0
    %v732 = vadd.f32 0.0, %v731
    %v733 = vpop.f32.mrb[0].mxu0
    %v734 = vadd.f32 0.0, %v733
    %735 = vdwg.mxu0
    %v736 = vadd.f32 %v660, %v732
    %v737 = vadd.f32 %v661, %v734
    %v738 = vxor.u32 %v736, 2147483648
    %v739 = vxor.u32 %v737, 2147483648
    %v740 = vmul.f32 %v738, 1.442695
    %v741 = vpow.pop %v740
    %v742 = vmul.f32 %v739, 1.442695
    %v743 = vpow.pop %v742
    %v744 = vadd.f32 %v741, 1.0
    %v745 = vadd.f32 %v743, 1.0
    %v746 = vrcp.pop %v744
    %v747 = vmul.f32 1.0, %v746
    %v748 = vrcp.pop %v745
    %v749 = vmul.f32 1.0, %v748
    %v750 = vtanh.pop %v737
    %v751 = vmul.f32 %v747, %v542
    %753 = vrot.lane.b32.xlu0 %v750, 64
    %v754 = vpop.permute.xlu0 %753
    %v756 = vmul.f32 %v747, %v754
    %758 = vrot.lane.b32.xlu0 %v756, 64
    %v759 = vpop.permute.xlu0 %758
    %v761 = vadd.f32 %v751, %v759
    %v762 = vtanh.pop %v761
    %764 = vrot.lane.b32.xlu0 %v762, 64
    %v765 = vpop.permute.xlu0 %764
    %v767 = vmul.f32 %v749, %v765
    %769 = vrot.lane.b32.xlu0 %v654, 64
    %v770 = vpop.permute.xlu0 %769
    %v772 = vsel %vm217, %v767, %v770
    %773 = vmatprep.subr.mxu0 %v180
    %774 = vmatpush1.msra.mxu0 %v179
    %775 = vmatprep.subr.mxu0 %v182
    %776 = vmatpush1.msra.mxu0 %v181
    %777 = vmatprep.subr.mxu0 %v184
    %778 = vmatpush1.msra.mxu0 %v183
    %779 = vmatprep.subr.mxu0 %v186
    %780 = vmatpush1.msra.mxu0 %v185
    %781 = vmatprep.subr.mxu0 %v188
    %782 = vmatpush1.msra.mxu0 %v187
    %783 = vmatprep.subr.mxu0 %v190
    %784 = vmatpush1.msra.mxu0 %v189
    %785 = vmatprep.subr.mxu0 %v192
    %786 = vmatpush1.msra.mxu0 %v191
    %787 = vmatprep.subr.mxu0 %v194
    %788 = vmatpush1.msra.mxu0 %v193
    %789 = vmatprep.subr.mxu0 %v196
    %790 = vmatpush1.msra.mxu0 %v195
    %791 = vmatprep.subr.mxu0 %v198
    %792 = vmatpush1.msra.mxu0 %v197
    %793 = vmatprep.subr.mxu0 %v200
    %794 = vmatpush1.msra.mxu0 %v199
    %795 = vmatprep.subr.mxu0 %v202
    %796 = vmatpush1.msra.mxu0 %v201
    %797 = vmatprep.subr.mxu0 %v204
    %798 = vmatpush1.msra.mxu0 %v203
    %799 = vmatprep.subr.mxu0 %v206
    %800 = vmatpush1.msra.mxu0 %v205
    %801 = vmatprep.subr.mxu0 %v208
    %802 = vmatpush1.msra.mxu0 %v207
    %803 = vmatprep.subr.mxu0 %v210
    %804 = vmatpush1.msra.mxu0 %v209
    %805 = vmatprep.subr.mxu0 0.0
    %806 = vmatpush1.msra.mxu0 0.0
    %807 = vmatprep.subr.mxu0 0.0
    %808 = vmatpush1.msra.mxu0 0.0
    %809 = vmatprep.subr.mxu0 0.0
    %810 = vmatpush1.msra.mxu0 0.0
    %811 = vmatprep.subr.mxu0 0.0
    %812 = vmatpush1.msra.mxu0 0.0
    %813 = vmatprep.subr.mxu0 0.0
    %814 = vmatpush1.msra.mxu0 0.0
    %815 = vmatprep.subr.mxu0 0.0
    %816 = vmatpush1.msra.mxu0 0.0
    %817 = vmatprep.subr.mxu0 0.0
    %818 = vmatpush1.msra.mxu0 0.0
    %819 = vmatprep.subr.mxu0 0.0
    %820 = vmatpush1.msra.mxu0 0.0
    %821 = vmatprep.subr.mxu0 0.0
    %822 = vmatpush1.msra.mxu0 0.0
    %823 = vmatprep.subr.mxu0 0.0
    %824 = vmatpush1.msra.mxu0 0.0
    %825 = vmatprep.subr.mxu0 0.0
    %826 = vmatpush1.msra.mxu0 0.0
    %827 = vmatprep.subr.mxu0 0.0
    %828 = vmatpush1.msra.mxu0 0.0
    %829 = vmatprep.subr.mxu0 0.0
    %830 = vmatpush1.msra.mxu0 0.0
    %831 = vmatprep.subr.mxu0 0.0
    %832 = vmatpush1.msra.mxu0 0.0
    %833 = vmatprep.subr.mxu0 0.0
    %834 = vmatpush1.msra.mxu0 0.0
    %835 = vmatprep.subr.mxu0 0.0
    %836 = vmatpush1.msra.mxu0 0.0
    %837 = vmatprep.mubr.f32.mxu0 0.0
    %838 = vmatmul.mubr.f32.gmra.mrb[0].mxu0 %v772
    %v839 = vpop.f32.mrb[0].mxu0
    %v840 = vadd.f32 %v329, %v839
    %v841 = vpop.f32.mrb[0].mxu0
    %v842 = vadd.f32 %v333, %v841
    %843 = vdwg.mxu0
    %v844 = vxor.u32 %v840, 2147483648
    %v845 = vxor.u32 %v842, 2147483648
    %v846 = vmul.f32 %v844, 1.442695
    %v847 = vpow.pop %v846
    %v848 = vmul.f32 %v845, 1.442695
    %v849 = vpow.pop %v848
    %v850 = vadd.f32 %v847, 1.0
    %v851 = vadd.f32 %v849, 1.0
    %v852 = vrcp.pop %v850
    %v853 = vmul.f32 1.0, %v852
    %v854 = vrcp.pop %v851
    %v855 = vmul.f32 1.0, %v854
    %v856 = vtanh.pop %v842
    %v857 = vmul.f32 %v853, %v648
    %859 = vrot.lane.b32.xlu0 %v856, 64
    %v860 = vpop.permute.xlu0 %859
    %v862 = vmul.f32 %v853, %v860
    %864 = vrot.lane.b32.xlu0 %v862, 64
    %v865 = vpop.permute.xlu0 %864
    %v867 = vadd.f32 %v857, %v865
    %v868 = vtanh.pop %v867
    %870 = vrot.lane.b32.xlu0 %v868, 64
    %v871 = vpop.permute.xlu0 %870
    %v873 = vmul.f32 %v855, %v871
    %s874 = scalar_lea.vmem [#allocation3], 16
    %875 = vst.msk [vmem:[%s874] sm:$0xff] %vm217, %v873
    %s876 = smul.u32 3, 2
    %s877 = smul.addr %s876, 8
    %s878 = scalar_lea.vmem [#allocation2], %s877
    %v879 = vld [vmem:[%s878] sm:$0xff]
    %v880 = vld [vmem:[%s878 + $0x8] sm:$0xff]
    %v882 = vsel %vm217, %v767, 0
    %884 = vmatprep.subr.mxu0 %v164
    %885 = vmatpush1.msra.mxu0 %v163
    %886 = vmatprep.subr.mxu0 %v166
    %887 = vmatpush1.msra.mxu0 %v165
    %888 = vmatprep.subr.mxu0 %v168
    %889 = vmatpush1.msra.mxu0 %v167
    %890 = vmatprep.subr.mxu0 %v170
    %891 = vmatpush1.msra.mxu0 %v169
    %892 = vmatprep.subr.mxu0 %v172
    %893 = vmatpush1.msra.mxu0 %v171
    %894 = vmatprep.subr.mxu0 %v174
    %895 = vmatpush1.msra.mxu0 %v173
    %896 = vmatprep.subr.mxu0 %v176
    %897 = vmatpush1.msra.mxu0 %v175
    %898 = vmatprep.subr.mxu0 %v178
    %899 = vmatpush1.msra.mxu0 %v177
    %900 = vmatprep.subr.mxu0 0.0
    %901 = vmatpush1.msra.mxu0 0.0
    %902 = vmatprep.subr.mxu0 0.0
    %903 = vmatpush1.msra.mxu0 0.0
    %904 = vmatprep.subr.mxu0 0.0
    %905 = vmatpush1.msra.mxu0 0.0
    %906 = vmatprep.subr.mxu0 0.0
    %907 = vmatpush1.msra.mxu0 0.0
    %908 = vmatprep.subr.mxu0 0.0
    %909 = vmatpush1.msra.mxu0 0.0
    %910 = vmatprep.subr.mxu0 0.0
    %911 = vmatpush1.msra.mxu0 0.0
    %912 = vmatprep.subr.mxu0 0.0
    %913 = vmatpush1.msra.mxu0 0.0
    %914 = vmatprep.subr.mxu0 0.0
    %915 = vmatpush1.msra.mxu0 0.0
    %916 = vmatprep.subr.mxu0 0.0
    %917 = vmatpush1.msra.mxu0 0.0
    %918 = vmatprep.subr.mxu0 0.0
    %919 = vmatpush1.msra.mxu0 0.0
    %920 = vmatprep.subr.mxu0 0.0
    %921 = vmatpush1.msra.mxu0 0.0
    %922 = vmatprep.subr.mxu0 0.0
    %923 = vmatpush1.msra.mxu0 0.0
    %924 = vmatprep.subr.mxu0 0.0
    %925 = vmatpush1.msra.mxu0 0.0
    %926 = vmatprep.subr.mxu0 0.0
    %927 = vmatpush1.msra.mxu0 0.0
    %928 = vmatprep.subr.mxu0 0.0
    %929 = vmatpush1.msra.mxu0 0.0
    %930 = vmatprep.subr.mxu0 0.0
    %931 = vmatpush1.msra.mxu0 0.0
    %932 = vmatprep.subr.mxu0 0.0
    %933 = vmatpush1.msra.mxu0 0.0
    %934 = vmatprep.subr.mxu0 0.0
    %935 = vmatpush1.msra.mxu0 0.0
    %936 = vmatprep.subr.mxu0 0.0
    %937 = vmatpush1.msra.mxu0 0.0
    %938 = vmatprep.subr.mxu0 0.0
    %939 = vmatpush1.msra.mxu0 0.0
    %940 = vmatprep.subr.mxu0 0.0
    %941 = vmatpush1.msra.mxu0 0.0
    %942 = vmatprep.subr.mxu0 0.0
    %943 = vmatpush1.msra.mxu0 0.0
    %944 = vmatprep.subr.mxu0 0.0
    %945 = vmatpush1.msra.mxu0 0.0
    %946 = vmatprep.subr.mxu0 0.0
    %947 = vmatpush1.msra.mxu0 0.0
    %948 = vmatprep.mubr.f32.mxu0 0.0
    %949 = vmatmul.mubr.f32.gmra.mrb[0].mxu0 %v882
    %v950 = vpop.f32.mrb[0].mxu0
    %v951 = vadd.f32 0.0, %v950
    %v952 = vpop.f32.mrb[0].mxu0
    %v953 = vadd.f32 0.0, %v952
    %954 = vdwg.mxu0
    %v955 = vadd.f32 %v879, %v951
    %v956 = vadd.f32 %v880, %v953
    %v957 = vxor.u32 %v955, 2147483648
    %v958 = vxor.u32 %v956, 2147483648
    %v959 = vmul.f32 %v957, 1.442695
    %v960 = vpow.pop %v959
    %v961 = vmul.f32 %v958, 1.442695
    %v962 = vpow.pop %v961
    %v963 = vadd.f32 %v960, 1.0
    %v964 = vadd.f32 %v962, 1.0
    %v965 = vrcp.pop %v963
    %v966 = vmul.f32 1.0, %v965
    %v967 = vrcp.pop %v964
    %v968 = vmul.f32 1.0, %v967
    %v969 = vtanh.pop %v956
    %v970 = vmul.f32 %v966, %v761
    %972 = vrot.lane.b32.xlu0 %v969, 64
    %v973 = vpop.permute.xlu0 %972
    %v975 = vmul.f32 %v966, %v973
    %977 = vrot.lane.b32.xlu0 %v975, 64
    %v978 = vpop.permute.xlu0 %977
    %v980 = vadd.f32 %v970, %v978
    %v981 = vtanh.pop %v980
    %983 = vrot.lane.b32.xlu0 %v981, 64
    %v984 = vpop.permute.xlu0 %983
    %v986 = vmul.f32 %v968, %v984
    %988 = vrot.lane.b32.xlu0 %v873, 64
    %v989 = vpop.permute.xlu0 %988
    %v991 = vsel %vm217, %v986, %v989
    %992 = vmatprep.subr.mxu0 %v180
    %993 = vmatpush1.msra.mxu0 %v179
    %994 = vmatprep.subr.mxu0 %v182
    %995 = vmatpush1.msra.mxu0 %v181
    %996 = vmatprep.subr.mxu0 %v184
    %997 = vmatpush1.msra.mxu0 %v183
    %998 = vmatprep.subr.mxu0 %v186
    %999 = vmatpush1.msra.mxu0 %v185
    %1000 = vmatprep.subr.mxu0 %v188
    %1001 = vmatpush1.msra.mxu0 %v187
    %1002 = vmatprep.subr.mxu0 %v190
    %1003 = vmatpush1.msra.mxu0 %v189
    %1004 = vmatprep.subr.mxu0 %v192
    %1005 = vmatpush1.msra.mxu0 %v191
    %1006 = vmatprep.subr.mxu0 %v194
    %1007 = vmatpush1.msra.mxu0 %v193
    %1008 = vmatprep.subr.mxu0 %v196
    %1009 = vmatpush1.msra.mxu0 %v195
    %1010 = vmatprep.subr.mxu0 %v198
    %1011 = vmatpush1.msra.mxu0 %v197
    %1012 = vmatprep.subr.mxu0 %v200
    %1013 = vmatpush1.msra.mxu0 %v199
    %1014 = vmatprep.subr.mxu0 %v202
    %1015 = vmatpush1.msra.mxu0 %v201
    %1016 = vmatprep.subr.mxu0 %v204
    %1017 = vmatpush1.msra.mxu0 %v203
    %1018 = vmatprep.subr.mxu0 %v206
    %1019 = vmatpush1.msra.mxu0 %v205
    %1020 = vmatprep.subr.mxu0 %v208
    %1021 = vmatpush1.msra.mxu0 %v207
    %1022 = vmatprep.subr.mxu0 %v210
    %1023 = vmatpush1.msra.mxu0 %v209
    %1024 = vmatprep.subr.mxu0 0.0
    %1025 = vmatpush1.msra.mxu0 0.0
    %1026 = vmatprep.subr.mxu0 0.0
    %1027 = vmatpush1.msra.mxu0 0.0
    %1028 = vmatprep.subr.mxu0 0.0
    %1029 = vmatpush1.msra.mxu0 0.0
    %1030 = vmatprep.subr.mxu0 0.0
    %1031 = vmatpush1.msra.mxu0 0.0
    %1032 = vmatprep.subr.mxu0 0.0
    %1033 = vmatpush1.msra.mxu0 0.0
    %1034 = vmatprep.subr.mxu0 0.0
    %1035 = vmatpush1.msra.mxu0 0.0
    %1036 = vmatprep.subr.mxu0 0.0
    %1037 = vmatpush1.msra.mxu0 0.0
    %1038 = vmatprep.subr.mxu0 0.0
    %1039 = vmatpush1.msra.mxu0 0.0
    %1040 = vmatprep.subr.mxu0 0.0
    %1041 = vmatpush1.msra.mxu0 0.0
    %1042 = vmatprep.subr.mxu0 0.0
    %1043 = vmatpush1.msra.mxu0 0.0
    %1044 = vmatprep.subr.mxu0 0.0
    %1045 = vmatpush1.msra.mxu0 0.0
    %1046 = vmatprep.subr.mxu0 0.0
    %1047 = vmatpush1.msra.mxu0 0.0
    %1048 = vmatprep.subr.mxu0 0.0
    %1049 = vmatpush1.msra.mxu0 0.0
    %1050 = vmatprep.subr.mxu0 0.0
    %1051 = vmatpush1.msra.mxu0 0.0
    %1052 = vmatprep.subr.mxu0 0.0
    %1053 = vmatpush1.msra.mxu0 0.0
    %1054 = vmatprep.subr.mxu0 0.0
    %1055 = vmatpush1.msra.mxu0 0.0
    %1056 = vmatprep.mubr.f32.mxu0 0.0
    %1057 = vmatmul.mubr.f32.gmra.mrb[0].mxu0 %v991
    %v1058 = vpop.f32.mrb[0].mxu0
    %v1059 = vadd.f32 %v329, %v1058
    %v1060 = vpop.f32.mrb[0].mxu0
    %v1061 = vadd.f32 %v333, %v1060
    %1062 = vdwg.mxu0
    %v1063 = vxor.u32 %v1059, 2147483648
    %v1064 = vxor.u32 %v1061, 2147483648
    %v1065 = vmul.f32 %v1063, 1.442695
    %v1066 = vpow.pop %v1065
    %v1067 = vmul.f32 %v1064, 1.442695
    %v1068 = vpow.pop %v1067
    %v1069 = vadd.f32 %v1066, 1.0
    %v1070 = vadd.f32 %v1068, 1.0
    %v1071 = vrcp.pop %v1069
    %v1072 = vmul.f32 1.0, %v1071
    %v1073 = vrcp.pop %v1070
    %v1074 = vmul.f32 1.0, %v1073
    %v1075 = vtanh.pop %v1061
    %v1076 = vmul.f32 %v1072, %v867
    %1078 = vrot.lane.b32.xlu0 %v1075, 64
    %v1079 = vpop.permute.xlu0 %1078
    %v1081 = vmul.f32 %v1072, %v1079
    %1083 = vrot.lane.b32.xlu0 %v1081, 64
    %v1084 = vpop.permute.xlu0 %1083
    %v1086 = vadd.f32 %v1076, %v1084
    %v1087 = vtanh.pop %v1086
    %1089 = vrot.lane.b32.xlu0 %v1087, 64
    %v1090 = vpop.permute.xlu0 %1089
    %v1092 = vmul.f32 %v1074, %v1090
    %s1093 = scalar_lea.vmem [#allocation3], 24
    %1094 = vst.msk [vmem:[%s1093] sm:$0xff] %vm217, %v1092
    %s1095 = smul.u32 4, 2
    %s1096 = smul.addr %s1095, 8
    %s1097 = scalar_lea.vmem [#allocation2], %s1096
    %v1098 = vld [vmem:[%s1097] sm:$0xff]
    %v1099 = vld [vmem:[%s1097 + $0x8] sm:$0xff]
    %v1101 = vsel %vm217, %v986, 0
    %1103 = vmatprep.subr.mxu0 %v164
    %1104 = vmatpush1.msra.mxu0 %v163
    %1105 = vmatprep.subr.mxu0 %v166
    %1106 = vmatpush1.msra.mxu0 %v165
    %1107 = vmatprep.subr.mxu0 %v168
    %1108 = vmatpush1.msra.mxu0 %v167
    %1109 = vmatprep.subr.mxu0 %v170
    %1110 = vmatpush1.msra.mxu0 %v169
    %1111 = vmatprep.subr.mxu0 %v172
    %1112 = vmatpush1.msra.mxu0 %v171
    %1113 = vmatprep.subr.mxu0 %v174
    %1114 = vmatpush1.msra.mxu0 %v173
    %1115 = vmatprep.subr.mxu0 %v176
    %1116 = vmatpush1.msra.mxu0 %v175
    %1117 = vmatprep.subr.mxu0 %v178
    %1118 = vmatpush1.msra.mxu0 %v177
    %1119 = vmatprep.subr.mxu0 0.0
    %1120 = vmatpush1.msra.mxu0 0.0
    %1121 = vmatprep.subr.mxu0 0.0
    %1122 = vmatpush1.msra.mxu0 0.0
    %1123 = vmatprep.subr.mxu0 0.0
    %1124 = vmatpush1.msra.mxu0 0.0
    %1125 = vmatprep.subr.mxu0 0.0
    %1126 = vmatpush1.msra.mxu0 0.0
    %1127 = vmatprep.subr.mxu0 0.0
    %1128 = vmatpush1.msra.mxu0 0.0
    %1129 = vmatprep.subr.mxu0 0.0
    %1130 = vmatpush1.msra.mxu0 0.0
    %1131 = vmatprep.subr.mxu0 0.0
    %1132 = vmatpush1.msra.mxu0 0.0
    %1133 = vmatprep.subr.mxu0 0.0
    %1134 = vmatpush1.msra.mxu0 0.0
    %1135 = vmatprep.subr.mxu0 0.0
    %1136 = vmatpush1.msra.mxu0 0.0
    %1137 = vmatprep.subr.mxu0 0.0
    %1138 = vmatpush1.msra.mxu0 0.0
    %1139 = vmatprep.subr.mxu0 0.0
    %1140 = vmatpush1.msra.mxu0 0.0
    %1141 = vmatprep.subr.mxu0 0.0
    %1142 = vmatpush1.msra.mxu0 0.0
    %1143 = vmatprep.subr.mxu0 0.0
    %1144 = vmatpush1.msra.mxu0 0.0
    %1145 = vmatprep.subr.mxu0 0.0
    %1146 = vmatpush1.msra.mxu0 0.0
    %1147 = vmatprep.subr.mxu0 0.0
    %1148 = vmatpush1.msra.mxu0 0.0
    %1149 = vmatprep.subr.mxu0 0.0
    %1150 = vmatpush1.msra.mxu0 0.0
    %1151 = vmatprep.subr.mxu0 0.0
    %1152 = vmatpush1.msra.mxu0 0.0
    %1153 = vmatprep.subr.mxu0 0.0
    %1154 = vmatpush1.msra.mxu0 0.0
    %1155 = vmatprep.subr.mxu0 0.0
    %1156 = vmatpush1.msra.mxu0 0.0
    %1157 = vmatprep.subr.mxu0 0.0
    %1158 = vmatpush1.msra.mxu0 0.0
    %1159 = vmatprep.subr.mxu0 0.0
    %1160 = vmatpush1.msra.mxu0 0.0
    %1161 = vmatprep.subr.mxu0 0.0
    %1162 = vmatpush1.msra.mxu0 0.0
    %1163 = vmatprep.subr.mxu0 0.0
    %1164 = vmatpush1.msra.mxu0 0.0
    %1165 = vmatprep.subr.mxu0 0.0
    %1166 = vmatpush1.msra.mxu0 0.0
    %1167 = vmatprep.mubr.f32.mxu0 0.0
    %1168 = vmatmul.mubr.f32.gmra.mrb[0].mxu0 %v1101
    %v1169 = vpop.f32.mrb[0].mxu0
    %v1170 = vadd.f32 0.0, %v1169
    %v1171 = vpop.f32.mrb[0].mxu0
    %v1172 = vadd.f32 0.0, %v1171
    %1173 = vdwg.mxu0
    %v1174 = vadd.f32 %v1098, %v1170
    %v1175 = vadd.f32 %v1099, %v1172
    %v1176 = vxor.u32 %v1174, 2147483648
    %v1177 = vxor.u32 %v1175, 2147483648
    %v1178 = vmul.f32 %v1176, 1.442695
    %v1179 = vpow.pop %v1178
    %v1180 = vmul.f32 %v1177, 1.442695
    %v1181 = vpow.pop %v1180
    %v1182 = vadd.f32 %v1179, 1.0
    %v1183 = vadd.f32 %v1181, 1.0
    %v1184 = vrcp.pop %v1182
    %v1185 = vmul.f32 1.0, %v1184
    %v1186 = vrcp.pop %v1183
    %v1187 = vmul.f32 1.0, %v1186
    %v1188 = vtanh.pop %v1175
    %v1189 = vmul.f32 %v1185, %v980
    %1191 = vrot.lane.b32.xlu0 %v1188, 64
    %v1192 = vpop.permute.xlu0 %1191
    %v1194 = vmul.f32 %v1185, %v1192
    %1196 = vrot.lane.b32.xlu0 %v1194, 64
    %v1197 = vpop.permute.xlu0 %1196
    %v1199 = vadd.f32 %v1189, %v1197
    %v1200 = vtanh.pop %v1199
    %1202 = vrot.lane.b32.xlu0 %v1200, 64
    %v1203 = vpop.permute.xlu0 %1202
    %v1205 = vmul.f32 %v1187, %v1203
    %1207 = vrot.lane.b32.xlu0 %v1092, 64
    %v1208 = vpop.permute.xlu0 %1207
    %v1210 = vsel %vm217, %v1205, %v1208
    %1211 = vmatprep.subr.mxu0 %v180
    %1212 = vmatpush1.msra.mxu0 %v179
    %1213 = vmatprep.subr.mxu0 %v182
    %1214 = vmatpush1.msra.mxu0 %v181
    %1215 = vmatprep.subr.mxu0 %v184
    %1216 = vmatpush1.msra.mxu0 %v183
    %1217 = vmatprep.subr.mxu0 %v186
    %1218 = vmatpush1.msra.mxu0 %v185
    %1219 = vmatprep.subr.mxu0 %v188
    %1220 = vmatpush1.msra.mxu0 %v187
    %1221 = vmatprep.subr.mxu0 %v190
    %1222 = vmatpush1.msra.mxu0 %v189
    %1223 = vmatprep.subr.mxu0 %v192
    %1224 = vmatpush1.msra.mxu0 %v191
    %1225 = vmatprep.subr.mxu0 %v194
    %1226 = vmatpush1.msra.mxu0 %v193
    %1227 = vmatprep.subr.mxu0 %v196
    %1228 = vmatpush1.msra.mxu0 %v195
    %1229 = vmatprep.subr.mxu0 %v198
    %1230 = vmatpush1.msra.mxu0 %v197
    %1231 = vmatprep.subr.mxu0 %v200
    %1232 = vmatpush1.msra.mxu0 %v199
    %1233 = vmatprep.subr.mxu0 %v202
    %1234 = vmatpush1.msra.mxu0 %v201
    %1235 = vmatprep.subr.mxu0 %v204
    %1236 = vmatpush1.msra.mxu0 %v203
    %1237 = vmatprep.subr.mxu0 %v206
    %1238 = vmatpush1.msra.mxu0 %v205
    %1239 = vmatprep.subr.mxu0 %v208
    %1240 = vmatpush1.msra.mxu0 %v207
    %1241 = vmatprep.subr.mxu0 %v210
    %1242 = vmatpush1.msra.mxu0 %v209
    %1243 = vmatprep.subr.mxu0 0.0
    %1244 = vmatpush1.msra.mxu0 0.0
    %1245 = vmatprep.subr.mxu0 0.0
    %1246 = vmatpush1.msra.mxu0 0.0
    %1247 = vmatprep.subr.mxu0 0.0
    %1248 = vmatpush1.msra.mxu0 0.0
    %1249 = vmatprep.subr.mxu0 0.0
    %1250 = vmatpush1.msra.mxu0 0.0
    %1251 = vmatprep.subr.mxu0 0.0
    %1252 = vmatpush1.msra.mxu0 0.0
    %1253 = vmatprep.subr.mxu0 0.0
    %1254 = vmatpush1.msra.mxu0 0.0
    %1255 = vmatprep.subr.mxu0 0.0
    %1256 = vmatpush1.msra.mxu0 0.0
    %1257 = vmatprep.subr.mxu0 0.0
    %1258 = vmatpush1.msra.mxu0 0.0
    %1259 = vmatprep.subr.mxu0 0.0
    %1260 = vmatpush1.msra.mxu0 0.0
    %1261 = vmatprep.subr.mxu0 0.0
    %1262 = vmatpush1.msra.mxu0 0.0
    %1263 = vmatprep.subr.mxu0 0.0
    %1264 = vmatpush1.msra.mxu0 0.0
    %1265 = vmatprep.subr.mxu0 0.0
    %1266 = vmatpush1.msra.mxu0 0.0
    %1267 = vmatprep.subr.mxu0 0.0
    %1268 = vmatpush1.msra.mxu0 0.0
    %1269 = vmatprep.subr.mxu0 0.0
    %1270 = vmatpush1.msra.mxu0 0.0
    %1271 = vmatprep.subr.mxu0 0.0
    %1272 = vmatpush1.msra.mxu0 0.0
    %1273 = vmatprep.subr.mxu0 0.0
    %1274 = vmatpush1.msra.mxu0 0.0
    %1275 = vmatprep.mubr.f32.mxu0 0.0
    %1276 = vmatmul.mubr.f32.gmra.mrb[0].mxu0 %v1210
    %v1277 = vpop.f32.mrb[0].mxu0
    %v1278 = vadd.f32 %v329, %v1277
    %v1279 = vpop.f32.mrb[0].mxu0
    %v1280 = vadd.f32 %v333, %v1279
    %1281 = vdwg.mxu0
    %v1282 = vxor.u32 %v1278, 2147483648
    %v1283 = vxor.u32 %v1280, 2147483648
    %v1284 = vmul.f32 %v1282, 1.442695
    %v1285 = vpow.pop %v1284
    %v1286 = vmul.f32 %v1283, 1.442695
    %v1287 = vpow.pop %v1286
    %v1288 = vadd.f32 %v1285, 1.0
    %v1289 = vadd.f32 %v1287, 1.0
    %v1290 = vrcp.pop %v1288
    %v1291 = vmul.f32 1.0, %v1290
    %v1292 = vrcp.pop %v1289
    %v1293 = vmul.f32 1.0, %v1292
    %v1294 = vtanh.pop %v1280
    %v1295 = vmul.f32 %v1291, %v1086
    %1297 = vrot.lane.b32.xlu0 %v1294, 64
    %v1298 = vpop.permute.xlu0 %1297
    %v1300 = vmul.f32 %v1291, %v1298
    %1302 = vrot.lane.b32.xlu0 %v1300, 64
    %v1303 = vpop.permute.xlu0 %1302
    %v1305 = vadd.f32 %v1295, %v1303
    %v1306 = vtanh.pop %v1305
    %1308 = vrot.lane.b32.xlu0 %v1306, 64
    %v1309 = vpop.permute.xlu0 %1308
    %v1311 = vmul.f32 %v1293, %v1309
    %s1312 = scalar_lea.vmem [#allocation3], 32
    %1313 = vst.msk [vmem:[%s1312] sm:$0xff] %vm217, %v1311
    %s1314 = smul.u32 5, 2
    %s1315 = smul.addr %s1314, 8
    %s1316 = scalar_lea.vmem [#allocation2], %s1315
    %v1317 = vld [vmem:[%s1316] sm:$0xff]
    %v1318 = vld [vmem:[%s1316 + $0x8] sm:$0xff]
    %v1320 = vsel %vm217, %v1205, 0
    %1322 = vmatprep.subr.mxu0 %v164
    %1323 = vmatpush1.msra.mxu0 %v163
    %1324 = vmatprep.subr.mxu0 %v166
    %1325 = vmatpush1.msra.mxu0 %v165
    %1326 = vmatprep.subr.mxu0 %v168
    %1327 = vmatpush1.msra.mxu0 %v167
    %1328 = vmatprep.subr.mxu0 %v170
    %1329 = vmatpush1.msra.mxu0 %v169
    %1330 = vmatprep.subr.mxu0 %v172
    %1331 = vmatpush1.msra.mxu0 %v171
    %1332 = vmatprep.subr.mxu0 %v174
    %1333 = vmatpush1.msra.mxu0 %v173
    %1334 = vmatprep.subr.mxu0 %v176
    %1335 = vmatpush1.msra.mxu0 %v175
    %1336 = vmatprep.subr.mxu0 %v178
    %1337 = vmatpush1.msra.mxu0 %v177
    %1338 = vmatprep.subr.mxu0 0.0
    %1339 = vmatpush1.msra.mxu0 0.0
    %1340 = vmatprep.subr.mxu0 0.0
    %1341 = vmatpush1.msra.mxu0 0.0
    %1342 = vmatprep.subr.mxu0 0.0
    %1343 = vmatpush1.msra.mxu0 0.0
    %1344 = vmatprep.subr.mxu0 0.0
    %1345 = vmatpush1.msra.mxu0 0.0
    %1346 = vmatprep.subr.mxu0 0.0
    %1347 = vmatpush1.msra.mxu0 0.0
    %1348 = vmatprep.subr.mxu0 0.0
    %1349 = vmatpush1.msra.mxu0 0.0
    %1350 = vmatprep.subr.mxu0 0.0
    %1351 = vmatpush1.msra.mxu0 0.0
    %1352 = vmatprep.subr.mxu0 0.0
    %1353 = vmatpush1.msra.mxu0 0.0
    %1354 = vmatprep.subr.mxu0 0.0
    %1355 = vmatpush1.msra.mxu0 0.0
    %1356 = vmatprep.subr.mxu0 0.0
    %1357 = vmatpush1.msra.mxu0 0.0
    %1358 = vmatprep.subr.mxu0 0.0
    %1359 = vmatpush1.msra.mxu0 0.0
    %1360 = vmatprep.subr.mxu0 0.0
    %1361 = vmatpush1.msra.mxu0 0.0
    %1362 = vmatprep.subr.mxu0 0.0
    %1363 = vmatpush1.msra.mxu0 0.0
    %1364 = vmatprep.subr.mxu0 0.0
    %1365 = vmatpush1.msra.mxu0 0.0
    %1366 = vmatprep.subr.mxu0 0.0
    %1367 = vmatpush1.msra.mxu0 0.0
    %1368 = vmatprep.subr.mxu0 0.0
    %1369 = vmatpush1.msra.mxu0 0.0
    %1370 = vmatprep.subr.mxu0 0.0
    %1371 = vmatpush1.msra.mxu0 0.0
    %1372 = vmatprep.subr.mxu0 0.0
    %1373 = vmatpush1.msra.mxu0 0.0
    %1374 = vmatprep.subr.mxu0 0.0
    %1375 = vmatpush1.msra.mxu0 0.0
    %1376 = vmatprep.subr.mxu0 0.0
    %1377 = vmatpush1.msra.mxu0 0.0
    %1378 = vmatprep.subr.mxu0 0.0
    %1379 = vmatpush1.msra.mxu0 0.0
    %1380 = vmatprep.subr.mxu0 0.0
    %1381 = vmatpush1.msra.mxu0 0.0
    %1382 = vmatprep.subr.mxu0 0.0
    %1383 = vmatpush1.msra.mxu0 0.0
    %1384 = vmatprep.subr.mxu0 0.0
    %1385 = vmatpush1.msra.mxu0 0.0
    %1386 = vmatprep.mubr.f32.mxu0 0.0
    %1387 = vmatmul.mubr.f32.gmra.mrb[0].mxu0 %v1320
    %v1388 = vpop.f32.mrb[0].mxu0
    %v1389 = vadd.f32 0.0, %v1388
    %v1390 = vpop.f32.mrb[0].mxu0
    %v1391 = vadd.f32 0.0, %v1390
    %1392 = vdwg.mxu0
    %v1393 = vadd.f32 %v1317, %v1389
    %v1394 = vadd.f32 %v1318, %v1391
    %v1395 = vxor.u32 %v1393, 2147483648
    %v1396 = vxor.u32 %v1394, 2147483648
    %v1397 = vmul.f32 %v1395, 1.442695
    %v1398 = vpow.pop %v1397
    %v1399 = vmul.f32 %v1396, 1.442695
    %v1400 = vpow.pop %v1399
    %v1401 = vadd.f32 %v1398, 1.0
    %v1402 = vadd.f32 %v1400, 1.0
    %v1403 = vrcp.pop %v1401
    %v1404 = vmul.f32 1.0, %v1403
    %v1405 = vrcp.pop %v1402
    %v1406 = vmul.f32 1.0, %v1405
    %v1407 = vtanh.pop %v1394
    %v1408 = vmul.f32 %v1404, %v1199
    %1410 = vrot.lane.b32.xlu0 %v1407, 64
    %v1411 = vpop.permute.xlu0 %1410
    %v1413 = vmul.f32 %v1404, %v1411
    %1415 = vrot.lane.b32.xlu0 %v1413, 64
    %v1416 = vpop.permute.xlu0 %1415
    %v1418 = vadd.f32 %v1408, %v1416
    %v1419 = vtanh.pop %v1418
    %1421 = vrot.lane.b32.xlu0 %v1419, 64
    %v1422 = vpop.permute.xlu0 %1421
    %v1424 = vmul.f32 %v1406, %v1422
    %1426 = vrot.lane.b32.xlu0 %v1311, 64
    %v1427 = vpop.permute.xlu0 %1426
    %v1429 = vsel %vm217, %v1424, %v1427
    %1430 = vmatprep.subr.mxu0 %v180
    %1431 = vmatpush1.msra.mxu0 %v179
    %1432 = vmatprep.subr.mxu0 %v182
    %1433 = vmatpush1.msra.mxu0 %v181
    %1434 = vmatprep.subr.mxu0 %v184
    %1435 = vmatpush1.msra.mxu0 %v183
    %1436 = vmatprep.subr.mxu0 %v186
    %1437 = vmatpush1.msra.mxu0 %v185
    %1438 = vmatprep.subr.mxu0 %v188
    %1439 = vmatpush1.msra.mxu0 %v187
    %1440 = vmatprep.subr.mxu0 %v190
    %1441 = vmatpush1.msra.mxu0 %v189
    %1442 = vmatprep.subr.mxu0 %v192
    %1443 = vmatpush1.msra.mxu0 %v191
    %1444 = vmatprep.subr.mxu0 %v194
    %1445 = vmatpush1.msra.mxu0 %v193
    %1446 = vmatprep.subr.mxu0 %v196
    %1447 = vmatpush1.msra.mxu0 %v195
    %1448 = vmatprep.subr.mxu0 %v198
    %1449 = vmatpush1.msra.mxu0 %v197
    %1450 = vmatprep.subr.mxu0 %v200
    %1451 = vmatpush1.msra.mxu0 %v199
    %1452 = vmatprep.subr.mxu0 %v202
    %1453 = vmatpush1.msra.mxu0 %v201
    %1454 = vmatprep.subr.mxu0 %v204
    %1455 = vmatpush1.msra.mxu0 %v203
    %1456 = vmatprep.subr.mxu0 %v206
    %1457 = vmatpush1.msra.mxu0 %v205
    %1458 = vmatprep.subr.mxu0 %v208
    %1459 = vmatpush1.msra.mxu0 %v207
    %1460 = vmatprep.subr.mxu0 %v210
    %1461 = vmatpush1.msra.mxu0 %v209
    %1462 = vmatprep.subr.mxu0 0.0
    %1463 = vmatpush1.msra.mxu0 0.0
    %1464 = vmatprep.subr.mxu0 0.0
    %1465 = vmatpush1.msra.mxu0 0.0
    %1466 = vmatprep.subr.mxu0 0.0
    %1467 = vmatpush1.msra.mxu0 0.0
    %1468 = vmatprep.subr.mxu0 0.0
    %1469 = vmatpush1.msra.mxu0 0.0
    %1470 = vmatprep.subr.mxu0 0.0
    %1471 = vmatpush1.msra.mxu0 0.0
    %1472 = vmatprep.subr.mxu0 0.0
    %1473 = vmatpush1.msra.mxu0 0.0
    %1474 = vmatprep.subr.mxu0 0.0
    %1475 = vmatpush1.msra.mxu0 0.0
    %1476 = vmatprep.subr.mxu0 0.0
    %1477 = vmatpush1.msra.mxu0 0.0
    %1478 = vmatprep.subr.mxu0 0.0
    %1479 = vmatpush1.msra.mxu0 0.0
    %1480 = vmatprep.subr.mxu0 0.0
    %1481 = vmatpush1.msra.mxu0 0.0
    %1482 = vmatprep.subr.mxu0 0.0
    %1483 = vmatpush1.msra.mxu0 0.0
    %1484 = vmatprep.subr.mxu0 0.0
    %1485 = vmatpush1.msra.mxu0 0.0
    %1486 = vmatprep.subr.mxu0 0.0
    %1487 = vmatpush1.msra.mxu0 0.0
    %1488 = vmatprep.subr.mxu0 0.0
    %1489 = vmatpush1.msra.mxu0 0.0
    %1490 = vmatprep.subr.mxu0 0.0
    %1491 = vmatpush1.msra.mxu0 0.0
    %1492 = vmatprep.subr.mxu0 0.0
    %1493 = vmatpush1.msra.mxu0 0.0
    %1494 = vmatprep.mubr.f32.mxu0 0.0
    %1495 = vmatmul.mubr.f32.gmra.mrb[0].mxu0 %v1429
    %v1496 = vpop.f32.mrb[0].mxu0
    %v1497 = vadd.f32 %v329, %v1496
    %v1498 = vpop.f32.mrb[0].mxu0
    %v1499 = vadd.f32 %v333, %v1498
    %1500 = vdwg.mxu0
    %v1501 = vxor.u32 %v1497, 2147483648
    %v1502 = vxor.u32 %v1499, 2147483648
    %v1503 = vmul.f32 %v1501, 1.442695
    %v1504 = vpow.pop %v1503
    %v1505 = vmul.f32 %v1502, 1.442695
    %v1506 = vpow.pop %v1505
    %v1507 = vadd.f32 %v1504, 1.0
    %v1508 = vadd.f32 %v1506, 1.0
    %v1509 = vrcp.pop %v1507
    %v1510 = vmul.f32 1.0, %v1509
    %v1511 = vrcp.pop %v1508
    %v1512 = vmul.f32 1.0, %v1511
    %v1513 = vtanh.pop %v1499
    %v1514 = vmul.f32 %v1510, %v1305
    %1516 = vrot.lane.b32.xlu0 %v1513, 64
    %v1517 = vpop.permute.xlu0 %1516
    %v1519 = vmul.f32 %v1510, %v1517
    %1521 = vrot.lane.b32.xlu0 %v1519, 64
    %v1522 = vpop.permute.xlu0 %1521
    %v1524 = vadd.f32 %v1514, %v1522
    %v1525 = vtanh.pop %v1524
    %1527 = vrot.lane.b32.xlu0 %v1525, 64
    %v1528 = vpop.permute.xlu0 %1527
    %v1530 = vmul.f32 %v1512, %v1528
    %s1531 = scalar_lea.vmem [#allocation3], 40
    %1532 = vst.msk [vmem:[%s1531] sm:$0xff] %vm217, %v1530
    %s1533 = smul.u32 6, 2
    %s1534 = smul.addr %s1533, 8
    %s1535 = scalar_lea.vmem [#allocation2], %s1534
    %v1536 = vld [vmem:[%s1535] sm:$0xff]
    %v1537 = vld [vmem:[%s1535 + $0x8] sm:$0xff]
    %v1539 = vsel %vm217, %v1424, 0
    %1541 = vmatprep.subr.mxu0 %v164
    %1542 = vmatpush1.msra.mxu0 %v163
    %1543 = vmatprep.subr.mxu0 %v166
    %1544 = vmatpush1.msra.mxu0 %v165
    %1545 = vmatprep.subr.mxu0 %v168
    %1546 = vmatpush1.msra.mxu0 %v167
    %1547 = vmatprep.subr.mxu0 %v170
    %1548 = vmatpush1.msra.mxu0 %v169
    %1549 = vmatprep.subr.mxu0 %v172
    %1550 = vmatpush1.msra.mxu0 %v171
    %1551 = vmatprep.subr.mxu0 %v174
    %1552 = vmatpush1.msra.mxu0 %v173
    %1553 = vmatprep.subr.mxu0 %v176
    %1554 = vmatpush1.msra.mxu0 %v175
    %1555 = vmatprep.subr.mxu0 %v178
    %1556 = vmatpush1.msra.mxu0 %v177
    %1557 = vmatprep.subr.mxu0 0.0
    %1558 = vmatpush1.msra.mxu0 0.0
    %1559 = vmatprep.subr.mxu0 0.0
    %1560 = vmatpush1.msra.mxu0 0.0
    %1561 = vmatprep.subr.mxu0 0.0
    %1562 = vmatpush1.msra.mxu0 0.0
    %1563 = vmatprep.subr.mxu0 0.0
    %1564 = vmatpush1.msra.mxu0 0.0
    %1565 = vmatprep.subr.mxu0 0.0
    %1566 = vmatpush1.msra.mxu0 0.0
    %1567 = vmatprep.subr.mxu0 0.0
    %1568 = vmatpush1.msra.mxu0 0.0
    %1569 = vmatprep.subr.mxu0 0.0
    %1570 = vmatpush1.msra.mxu0 0.0
    %1571 = vmatprep.subr.mxu0 0.0
    %1572 = vmatpush1.msra.mxu0 0.0
    %1573 = vmatprep.subr.mxu0 0.0
    %1574 = vmatpush1.msra.mxu0 0.0
    %1575 = vmatprep.subr.mxu0 0.0
    %1576 = vmatpush1.msra.mxu0 0.0
    %1577 = vmatprep.subr.mxu0 0.0
    %1578 = vmatpush1.msra.mxu0 0.0
    %1579 = vmatprep.subr.mxu0 0.0
    %1580 = vmatpush1.msra.mxu0 0.0
    %1581 = vmatprep.subr.mxu0 0.0
    %1582 = vmatpush1.msra.mxu0 0.0
    %1583 = vmatprep.subr.mxu0 0.0
    %1584 = vmatpush1.msra.mxu0 0.0
    %1585 = vmatprep.subr.mxu0 0.0
    %1586 = vmatpush1.msra.mxu0 0.0
    %1587 = vmatprep.subr.mxu0 0.0
    %1588 = vmatpush1.msra.mxu0 0.0
    %1589 = vmatprep.subr.mxu0 0.0
    %1590 = vmatpush1.msra.mxu0 0.0
    %1591 = vmatprep.subr.mxu0 0.0
    %1592 = vmatpush1.msra.mxu0 0.0
    %1593 = vmatprep.subr.mxu0 0.0
    %1594 = vmatpush1.msra.mxu0 0.0
    %1595 = vmatprep.subr.mxu0 0.0
    %1596 = vmatpush1.msra.mxu0 0.0
    %1597 = vmatprep.subr.mxu0 0.0
    %1598 = vmatpush1.msra.mxu0 0.0
    %1599 = vmatprep.subr.mxu0 0.0
    %1600 = vmatpush1.msra.mxu0 0.0
    %1601 = vmatprep.subr.mxu0 0.0
    %1602 = vmatpush1.msra.mxu0 0.0
    %1603 = vmatprep.subr.mxu0 0.0
    %1604 = vmatpush1.msra.mxu0 0.0
    %1605 = vmatprep.mubr.f32.mxu0 0.0
    %1606 = vmatmul.mubr.f32.gmra.mrb[0].mxu0 %v1539
    %v1607 = vpop.f32.mrb[0].mxu0
    %v1608 = vadd.f32 0.0, %v1607
    %v1609 = vpop.f32.mrb[0].mxu0
    %v1610 = vadd.f32 0.0, %v1609
    %1611 = vdwg.mxu0
    %v1612 = vadd.f32 %v1536, %v1608
    %v1613 = vadd.f32 %v1537, %v1610
    %v1614 = vxor.u32 %v1612, 2147483648
    %v1615 = vxor.u32 %v1613, 2147483648
    %v1616 = vmul.f32 %v1614, 1.442695
    %v1617 = vpow.pop %v1616
    %v1618 = vmul.f32 %v1615, 1.442695
    %v1619 = vpow.pop %v1618
    %v1620 = vadd.f32 %v1617, 1.0
    %v1621 = vadd.f32 %v1619, 1.0
    %v1622 = vrcp.pop %v1620
    %v1623 = vmul.f32 1.0, %v1622
    %v1624 = vrcp.pop %v1621
    %v1625 = vmul.f32 1.0, %v1624
    %v1626 = vtanh.pop %v1613
    %v1627 = vmul.f32 %v1623, %v1418
    %1629 = vrot.lane.b32.xlu0 %v1626, 64
    %v1630 = vpop.permute.xlu0 %1629
    %v1632 = vmul.f32 %v1623, %v1630
    %1634 = vrot.lane.b32.xlu0 %v1632, 64
    %v1635 = vpop.permute.xlu0 %1634
    %v1637 = vadd.f32 %v1627, %v1635
    %v1638 = vtanh.pop %v1637
    %1640 = vrot.lane.b32.xlu0 %v1638, 64
    %v1641 = vpop.permute.xlu0 %1640
    %v1643 = vmul.f32 %v1625, %v1641
    %1645 = vrot.lane.b32.xlu0 %v1530, 64
    %v1646 = vpop.permute.xlu0 %1645
    %v1648 = vsel %vm217, %v1643, %v1646
    %1649 = vmatprep.subr.mxu0 %v180
    %1650 = vmatpush1.msra.mxu0 %v179
    %1651 = vmatprep.subr.mxu0 %v182
    %1652 = vmatpush1.msra.mxu0 %v181
    %1653 = vmatprep.subr.mxu0 %v184
    %1654 = vmatpush1.msra.mxu0 %v183
    %1655 = vmatprep.subr.mxu0 %v186
    %1656 = vmatpush1.msra.mxu0 %v185
    %1657 = vmatprep.subr.mxu0 %v188
    %1658 = vmatpush1.msra.mxu0 %v187
    %1659 = vmatprep.subr.mxu0 %v190
    %1660 = vmatpush1.msra.mxu0 %v189
    %1661 = vmatprep.subr.mxu0 %v192
    %1662 = vmatpush1.msra.mxu0 %v191
    %1663 = vmatprep.subr.mxu0 %v194
    %1664 = vmatpush1.msra.mxu0 %v193
    %1665 = vmatprep.subr.mxu0 %v196
    %1666 = vmatpush1.msra.mxu0 %v195
    %1667 = vmatprep.subr.mxu0 %v198
    %1668 = vmatpush1.msra.mxu0 %v197
    %1669 = vmatprep.subr.mxu0 %v200
    %1670 = vmatpush1.msra.mxu0 %v199
    %1671 = vmatprep.subr.mxu0 %v202
    %1672 = vmatpush1.msra.mxu0 %v201
    %1673 = vmatprep.subr.mxu0 %v204
    %1674 = vmatpush1.msra.mxu0 %v203
    %1675 = vmatprep.subr.mxu0 %v206
    %1676 = vmatpush1.msra.mxu0 %v205
    %1677 = vmatprep.subr.mxu0 %v208
    %1678 = vmatpush1.msra.mxu0 %v207
    %1679 = vmatprep.subr.mxu0 %v210
    %1680 = vmatpush1.msra.mxu0 %v209
    %1681 = vmatprep.subr.mxu0 0.0
    %1682 = vmatpush1.msra.mxu0 0.0
    %1683 = vmatprep.subr.mxu0 0.0
    %1684 = vmatpush1.msra.mxu0 0.0
    %1685 = vmatprep.subr.mxu0 0.0
    %1686 = vmatpush1.msra.mxu0 0.0
    %1687 = vmatprep.subr.mxu0 0.0
    %1688 = vmatpush1.msra.mxu0 0.0
    %1689 = vmatprep.subr.mxu0 0.0
    %1690 = vmatpush1.msra.mxu0 0.0
    %1691 = vmatprep.subr.mxu0 0.0
    %1692 = vmatpush1.msra.mxu0 0.0
    %1693 = vmatprep.subr.mxu0 0.0
    %1694 = vmatpush1.msra.mxu0 0.0
    %1695 = vmatprep.subr.mxu0 0.0
    %1696 = vmatpush1.msra.mxu0 0.0
    %1697 = vmatprep.subr.mxu0 0.0
    %1698 = vmatpush1.msra.mxu0 0.0
    %1699 = vmatprep.subr.mxu0 0.0
    %1700 = vmatpush1.msra.mxu0 0.0
    %1701 = vmatprep.subr.mxu0 0.0
    %1702 = vmatpush1.msra.mxu0 0.0
    %1703 = vmatprep.subr.mxu0 0.0
    %1704 = vmatpush1.msra.mxu0 0.0
    %1705 = vmatprep.subr.mxu0 0.0
    %1706 = vmatpush1.msra.mxu0 0.0
    %1707 = vmatprep.subr.mxu0 0.0
    %1708 = vmatpush1.msra.mxu0 0.0
    %1709 = vmatprep.subr.mxu0 0.0
    %1710 = vmatpush1.msra.mxu0 0.0
    %1711 = vmatprep.subr.mxu0 0.0
    %1712 = vmatpush1.msra.mxu0 0.0
    %1713 = vmatprep.mubr.f32.mxu0 0.0
    %1714 = vmatmul.mubr.f32.gmra.mrb[0].mxu0 %v1648
    %v1715 = vpop.f32.mrb[0].mxu0
    %v1716 = vadd.f32 %v329, %v1715
    %v1717 = vpop.f32.mrb[0].mxu0
    %v1718 = vadd.f32 %v333, %v1717
    %1719 = vdwg.mxu0
    %v1720 = vxor.u32 %v1716, 2147483648
    %v1721 = vxor.u32 %v1718, 2147483648
    %v1722 = vmul.f32 %v1720, 1.442695
    %v1723 = vpow.pop %v1722
    %v1724 = vmul.f32 %v1721, 1.442695
    %v1725 = vpow.pop %v1724
    %v1726 = vadd.f32 %v1723, 1.0
    %v1727 = vadd.f32 %v1725, 1.0
    %v1728 = vrcp.pop %v1726
    %v1729 = vmul.f32 1.0, %v1728
    %v1730 = vrcp.pop %v1727
    %v1731 = vmul.f32 1.0, %v1730
    %v1732 = vtanh.pop %v1718
    %v1733 = vmul.f32 %v1729, %v1524
    %1735 = vrot.lane.b32.xlu0 %v1732, 64
    %v1736 = vpop.permute.xlu0 %1735
    %v1738 = vmul.f32 %v1729, %v1736
    %1740 = vrot.lane.b32.xlu0 %v1738, 64
    %v1741 = vpop.permute.xlu0 %1740
    %v1743 = vadd.f32 %v1733, %v1741
    %v1744 = vtanh.pop %v1743
    %1746 = vrot.lane.b32.xlu0 %v1744, 64
    %v1747 = vpop.permute.xlu0 %1746
    %v1749 = vmul.f32 %v1731, %v1747
    %s1750 = scalar_lea.vmem [#allocation3], 48
    %1751 = vst.msk [vmem:[%s1750] sm:$0xff] %vm217, %v1749
    %s1752 = smul.u32 7, 2
    %s1753 = smul.addr %s1752, 8
    %s1754 = scalar_lea.vmem [#allocation2], %s1753
    %v1755 = vld [vmem:[%s1754] sm:$0xff]
    %v1756 = vld [vmem:[%s1754 + $0x8] sm:$0xff]
    %v1758 = vsel %vm217, %v1643, 0
    %1760 = vmatprep.subr.mxu0 %v164
    %1761 = vmatpush1.msra.mxu0 %v163
    %1762 = vmatprep.subr.mxu0 %v166
    %1763 = vmatpush1.msra.mxu0 %v165
    %1764 = vmatprep.subr.mxu0 %v168
    %1765 = vmatpush1.msra.mxu0 %v167
    %1766 = vmatprep.subr.mxu0 %v170
    %1767 = vmatpush1.msra.mxu0 %v169
    %1768 = vmatprep.subr.mxu0 %v172
    %1769 = vmatpush1.msra.mxu0 %v171
    %1770 = vmatprep.subr.mxu0 %v174
    %1771 = vmatpush1.msra.mxu0 %v173
    %1772 = vmatprep.subr.mxu0 %v176
    %1773 = vmatpush1.msra.mxu0 %v175
    %1774 = vmatprep.subr.mxu0 %v178
    %1775 = vmatpush1.msra.mxu0 %v177
    %1776 = vmatprep.subr.mxu0 0.0
    %1777 = vmatpush1.msra.mxu0 0.0
    %1778 = vmatprep.subr.mxu0 0.0
    %1779 = vmatpush1.msra.mxu0 0.0
    %1780 = vmatprep.subr.mxu0 0.0
    %1781 = vmatpush1.msra.mxu0 0.0
    %1782 = vmatprep.subr.mxu0 0.0
    %1783 = vmatpush1.msra.mxu0 0.0
    %1784 = vmatprep.subr.mxu0 0.0
    %1785 = vmatpush1.msra.mxu0 0.0
    %1786 = vmatprep.subr.mxu0 0.0
    %1787 = vmatpush1.msra.mxu0 0.0
    %1788 = vmatprep.subr.mxu0 0.0
    %1789 = vmatpush1.msra.mxu0 0.0
    %1790 = vmatprep.subr.mxu0 0.0
    %1791 = vmatpush1.msra.mxu0 0.0
    %1792 = vmatprep.subr.mxu0 0.0
    %1793 = vmatpush1.msra.mxu0 0.0
    %1794 = vmatprep.subr.mxu0 0.0
    %1795 = vmatpush1.msra.mxu0 0.0
    %1796 = vmatprep.subr.mxu0 0.0
    %1797 = vmatpush1.msra.mxu0 0.0
    %1798 = vmatprep.subr.mxu0 0.0
    %1799 = vmatpush1.msra.mxu0 0.0
    %1800 = vmatprep.subr.mxu0 0.0
    %1801 = vmatpush1.msra.mxu0 0.0
    %1802 = vmatprep.subr.mxu0 0.0
    %1803 = vmatpush1.msra.mxu0 0.0
    %1804 = vmatprep.subr.mxu0 0.0
    %1805 = vmatpush1.msra.mxu0 0.0
    %1806 = vmatprep.subr.mxu0 0.0
    %1807 = vmatpush1.msra.mxu0 0.0
    %1808 = vmatprep.subr.mxu0 0.0
    %1809 = vmatpush1.msra.mxu0 0.0
    %1810 = vmatprep.subr.mxu0 0.0
    %1811 = vmatpush1.msra.mxu0 0.0
    %1812 = vmatprep.subr.mxu0 0.0
    %1813 = vmatpush1.msra.mxu0 0.0
    %1814 = vmatprep.subr.mxu0 0.0
    %1815 = vmatpush1.msra.mxu0 0.0
    %1816 = vmatprep.subr.mxu0 0.0
    %1817 = vmatpush1.msra.mxu0 0.0
    %1818 = vmatprep.subr.mxu0 0.0
    %1819 = vmatpush1.msra.mxu0 0.0
    %1820 = vmatprep.subr.mxu0 0.0
    %1821 = vmatpush1.msra.mxu0 0.0
    %1822 = vmatprep.subr.mxu0 0.0
    %1823 = vmatpush1.msra.mxu0 0.0
    %1824 = vmatprep.mubr.f32.mxu0 0.0
    %1825 = vmatmul.mubr.f32.gmra.mrb[0].mxu0 %v1758
    %v1826 = vpop.f32.mrb[0].mxu0
    %v1827 = vadd.f32 0.0, %v1826
    %v1828 = vpop.f32.mrb[0].mxu0
    %v1829 = vadd.f32 0.0, %v1828
    %1830 = vdwg.mxu0
    %v1831 = vadd.f32 %v1755, %v1827
    %v1832 = vadd.f32 %v1756, %v1829
    %v1833 = vxor.u32 %v1831, 2147483648
    %v1834 = vxor.u32 %v1832, 2147483648
    %v1835 = vmul.f32 %v1833, 1.442695
    %v1836 = vpow.pop %v1835
    %v1837 = vmul.f32 %v1834, 1.442695
    %v1838 = vpow.pop %v1837
    %v1839 = vadd.f32 %v1836, 1.0
    %v1840 = vadd.f32 %v1838, 1.0
    %v1841 = vrcp.pop %v1839
    %v1842 = vmul.f32 1.0, %v1841
    %v1843 = vrcp.pop %v1840
    %v1844 = vmul.f32 1.0, %v1843
    %v1845 = vtanh.pop %v1832
    %v1846 = vmul.f32 %v1842, %v1637
    %1848 = vrot.lane.b32.xlu0 %v1845, 64
    %v1849 = vpop.permute.xlu0 %1848
    %v1851 = vmul.f32 %v1842, %v1849
    %1853 = vrot.lane.b32.xlu0 %v1851, 64
    %v1854 = vpop.permute.xlu0 %1853
    %v1856 = vadd.f32 %v1846, %v1854
    %v1857 = vtanh.pop %v1856
    %1859 = vrot.lane.b32.xlu0 %v1857, 64
    %v1860 = vpop.permute.xlu0 %1859
    %v1862 = vmul.f32 %v1844, %v1860
    %1864 = vrot.lane.b32.xlu0 %v1749, 64
    %v1865 = vpop.permute.xlu0 %1864
    %v1867 = vsel %vm217, %v1862, %v1865
    %1868 = vmatprep.subr.mxu0 %v180
    %1869 = vmatpush1.msra.mxu0 %v179
    %1870 = vmatprep.subr.mxu0 %v182
    %1871 = vmatpush1.msra.mxu0 %v181
    %1872 = vmatprep.subr.mxu0 %v184
    %1873 = vmatpush1.msra.mxu0 %v183
    %1874 = vmatprep.subr.mxu0 %v186
    %1875 = vmatpush1.msra.mxu0 %v185
    %1876 = vmatprep.subr.mxu0 %v188
    %1877 = vmatpush1.msra.mxu0 %v187
    %1878 = vmatprep.subr.mxu0 %v190
    %1879 = vmatpush1.msra.mxu0 %v189
    %1880 = vmatprep.subr.mxu0 %v192
    %1881 = vmatpush1.msra.mxu0 %v191
    %1882 = vmatprep.subr.mxu0 %v194
    %1883 = vmatpush1.msra.mxu0 %v193
    %1884 = vmatprep.subr.mxu0 %v196
    %1885 = vmatpush1.msra.mxu0 %v195
    %1886 = vmatprep.subr.mxu0 %v198
    %1887 = vmatpush1.msra.mxu0 %v197
    %1888 = vmatprep.subr.mxu0 %v200
    %1889 = vmatpush1.msra.mxu0 %v199
    %1890 = vmatprep.subr.mxu0 %v202
    %1891 = vmatpush1.msra.mxu0 %v201
    %1892 = vmatprep.subr.mxu0 %v204
    %1893 = vmatpush1.msra.mxu0 %v203
    %1894 = vmatprep.subr.mxu0 %v206
    %1895 = vmatpush1.msra.mxu0 %v205
    %1896 = vmatprep.subr.mxu0 %v208
    %1897 = vmatpush1.msra.mxu0 %v207
    %1898 = vmatprep.subr.mxu0 %v210
    %1899 = vmatpush1.msra.mxu0 %v209
    %1900 = vmatprep.subr.mxu0 0.0
    %1901 = vmatpush1.msra.mxu0 0.0
    %1902 = vmatprep.subr.mxu0 0.0
    %1903 = vmatpush1.msra.mxu0 0.0
    %1904 = vmatprep.subr.mxu0 0.0
    %1905 = vmatpush1.msra.mxu0 0.0
    %1906 = vmatprep.subr.mxu0 0.0
    %1907 = vmatpush1.msra.mxu0 0.0
    %1908 = vmatprep.subr.mxu0 0.0
    %1909 = vmatpush1.msra.mxu0 0.0
    %1910 = vmatprep.subr.mxu0 0.0
    %1911 = vmatpush1.msra.mxu0 0.0
    %1912 = vmatprep.subr.mxu0 0.0
    %1913 = vmatpush1.msra.mxu0 0.0
    %1914 = vmatprep.subr.mxu0 0.0
    %1915 = vmatpush1.msra.mxu0 0.0
    %1916 = vmatprep.subr.mxu0 0.0
    %1917 = vmatpush1.msra.mxu0 0.0
    %1918 = vmatprep.subr.mxu0 0.0
    %1919 = vmatpush1.msra.mxu0 0.0
    %1920 = vmatprep.subr.mxu0 0.0
    %1921 = vmatpush1.msra.mxu0 0.0
    %1922 = vmatprep.subr.mxu0 0.0
    %1923 = vmatpush1.msra.mxu0 0.0
    %1924 = vmatprep.subr.mxu0 0.0
    %1925 = vmatpush1.msra.mxu0 0.0
    %1926 = vmatprep.subr.mxu0 0.0
    %1927 = vmatpush1.msra.mxu0 0.0
    %1928 = vmatprep.subr.mxu0 0.0
    %1929 = vmatpush1.msra.mxu0 0.0
    %1930 = vmatprep.subr.mxu0 0.0
    %1931 = vmatpush1.msra.mxu0 0.0
    %1932 = vmatprep.mubr.f32.mxu0 0.0
    %1933 = vmatmul.mubr.f32.gmra.mrb[0].mxu0 %v1867
    %v1934 = vpop.f32.mrb[0].mxu0
    %v1935 = vadd.f32 %v329, %v1934
    %v1936 = vpop.f32.mrb[0].mxu0
    %v1937 = vadd.f32 %v333, %v1936
    %1938 = vdwg.mxu0
    %v1939 = vxor.u32 %v1935, 2147483648
    %v1940 = vxor.u32 %v1937, 2147483648
    %v1941 = vmul.f32 %v1939, 1.442695
    %v1942 = vpow.pop %v1941
    %v1943 = vmul.f32 %v1940, 1.442695
    %v1944 = vpow.pop %v1943
    %v1945 = vadd.f32 %v1942, 1.0
    %v1946 = vadd.f32 %v1944, 1.0
    %v1947 = vrcp.pop %v1945
    %v1948 = vmul.f32 1.0, %v1947
    %v1949 = vrcp.pop %v1946
    %v1950 = vmul.f32 1.0, %v1949
    %v1951 = vtanh.pop %v1937
    %v1952 = vmul.f32 %v1948, %v1743
    %1954 = vrot.lane.b32.xlu0 %v1951, 64
    %v1955 = vpop.permute.xlu0 %1954
    %v1957 = vmul.f32 %v1948, %v1955
    %1959 = vrot.lane.b32.xlu0 %v1957, 64
    %v1960 = vpop.permute.xlu0 %1959
    %v1962 = vadd.f32 %v1952, %v1960
    %v1963 = vtanh.pop %v1962
    %1965 = vrot.lane.b32.xlu0 %v1963, 64
    %v1966 = vpop.permute.xlu0 %1965
    %v1968 = vmul.f32 %v1950, %v1966
    %s1969 = scalar_lea.vmem [#allocation3], 56
    %1970 = vst.msk [vmem:[%s1969] sm:$0xff] %vm217, %v1968
    %v1971 = vld [vmem:[#allocation3] sm:$0xff]
    %v1972 = vld [vmem:[#allocation3 + $0x8] sm:$0xff]
    %v1973 = vld [vmem:[#allocation3 + $0x10] sm:$0xff]
    %v1974 = vld [vmem:[#allocation3 + $0x18] sm:$0xff]
    %v1975 = vld [vmem:[#allocation3 + $0x20] sm:$0xff]
    %v1976 = vld [vmem:[#allocation3 + $0x28] sm:$0xff]
    %v1977 = vld [vmem:[#allocation3 + $0x30] sm:$0xff]
    %v1978 = vld [vmem:[#allocation3 + $0x38] sm:$0xff]
    %v1979 = vld [vmem:[%s6] sm:$0xff]
    %v1980 = vld [vmem:[%s6 + $0x8] sm:$0xff]
    %v1981 = vld [vmem:[%s6 + $0x10] sm:$0xff]
    %v1982 = vld [vmem:[%s6 + $0x18] sm:$0xff]
    %v1983 = vld [vmem:[%s6 + $0x20] sm:$0xff]
    %v1984 = vld [vmem:[%s6 + $0x28] sm:$0xff]
    %v1985 = vld [vmem:[%s6 + $0x30] sm:$0xff]
    %v1986 = vld [vmem:[%s6 + $0x38] sm:$0xff]
    %v1987 = vld [vmem:[%s7] sm:$0x1]
    %v1989 = vlaneseq
    %v1990 = vshrl.u32 %v1989, 7
    %v1991 = vsub.s32 0, %v1990
    %v1992 = vrot.slane %v1987, %v1991
    %v1995 = vsel %vm217, %v1971, 0
    %v1998 = vsel %vm217, %v1972, 0
    %v2001 = vsel %vm217, %v1973, 0
    %v2004 = vsel %vm217, %v1974, 0
    %v2007 = vsel %vm217, %v1975, 0
    %v2010 = vsel %vm217, %v1976, 0
    %v2013 = vsel %vm217, %v1977, 0
    %v2016 = vsel %vm217, %v1978, 0
    %2018 = vmatprep.subr.mxu0 0.0
    %2019 = vmatpush1.msra.mxu0 %v1979
    %2020 = vmatprep.subr.mxu0 0.0
    %2021 = vmatpush1.msra.mxu0 %v1980
    %2022 = vmatprep.subr.mxu0 0.0
    %2023 = vmatpush1.msra.mxu0 %v1981
    %2024 = vmatprep.subr.mxu0 0.0
    %2025 = vmatpush1.msra.mxu0 %v1982
    %2026 = vmatprep.subr.mxu0 0.0
    %2027 = vmatpush1.msra.mxu0 %v1983
    %2028 = vmatprep.subr.mxu0 0.0
    %2029 = vmatpush1.msra.mxu0 %v1984
    %2030 = vmatprep.subr.mxu0 0.0
    %2031 = vmatpush1.msra.mxu0 %v1985
    %2032 = vmatprep.subr.mxu0 0.0
    %2033 = vmatpush1.msra.mxu0 %v1986
    %2034 = vmatprep.subr.mxu0 0.0
    %2035 = vmatpush1.msra.mxu0 0.0
    %2036 = vmatprep.subr.mxu0 0.0
    %2037 = vmatpush1.msra.mxu0 0.0
    %2038 = vmatprep.subr.mxu0 0.0
    %2039 = vmatpush1.msra.mxu0 0.0
    %2040 = vmatprep.subr.mxu0 0.0
    %2041 = vmatpush1.msra.mxu0 0.0
    %2042 = vmatprep.subr.mxu0 0.0
    %2043 = vmatpush1.msra.mxu0 0.0
    %2044 = vmatprep.subr.mxu0 0.0
    %2045 = vmatpush1.msra.mxu0 0.0
    %2046 = vmatprep.subr.mxu0 0.0
    %2047 = vmatpush1.msra.mxu0 0.0
    %2048 = vmatprep.subr.mxu0 0.0
    %2049 = vmatpush1.msra.mxu0 0.0
    %2050 = vmatprep.subr.mxu0 0.0
    %2051 = vmatpush1.msra.mxu0 0.0
    %2052 = vmatprep.subr.mxu0 0.0
    %2053 = vmatpush1.msra.mxu0 0.0
    %2054 = vmatprep.subr.mxu0 0.0
    %2055 = vmatpush1.msra.mxu0 0.0
    %2056 = vmatprep.subr.mxu0 0.0
    %2057 = vmatpush1.msra.mxu0 0.0
    %2058 = vmatprep.subr.mxu0 0.0
    %2059 = vmatpush1.msra.mxu0 0.0
    %2060 = vmatprep.subr.mxu0 0.0
    %2061 = vmatpush1.msra.mxu0 0.0
    %2062 = vmatprep.subr.mxu0 0.0
    %2063 = vmatpush1.msra.mxu0 0.0
    %2064 = vmatprep.subr.mxu0 0.0
    %2065 = vmatpush1.msra.mxu0 0.0
    %2066 = vmatprep.subr.mxu0 0.0
    %2067 = vmatpush1.msra.mxu0 0.0
    %2068 = vmatprep.subr.mxu0 0.0
    %2069 = vmatpush1.msra.mxu0 0.0
    %2070 = vmatprep.subr.mxu0 0.0
    %2071 = vmatpush1.msra.mxu0 0.0
    %2072 = vmatprep.subr.mxu0 0.0
    %2073 = vmatpush1.msra.mxu0 0.0
    %2074 = vmatprep.subr.mxu0 0.0
    %2075 = vmatpush1.msra.mxu0 0.0
    %2076 = vmatprep.subr.mxu0 0.0
    %2077 = vmatpush1.msra.mxu0 0.0
    %2078 = vmatprep.subr.mxu0 0.0
    %2079 = vmatpush1.msra.mxu0 0.0
    %2080 = vmatprep.subr.mxu0 0.0
    %2081 = vmatpush1.msra.mxu0 0.0
    %2082 = vmatprep.mubr.f32.mxu0 0.0
    %2083 = vmatmul.mubr.f32.gmra.mrb[0].mxu0 %v1995
    %v2084 = vpop.f32.mrb[0].mxu0
    %v2085 = vadd.f32 %v1992, %v2084
    %v2086 = vpop.f32.mrb[0].mxu0
    %2087 = vmatprep.mubr.f32.mxu0 0.0
    %2088 = vmatmul.mubr.f32.gmra.mrb[0].mxu0 %v1998
    %v2089 = vpop.f32.mrb[0].mxu0
    %v2090 = vadd.f32 %v1992, %v2089
    %v2091 = vpop.f32.mrb[0].mxu0
    %2092 = vmatprep.mubr.f32.mxu0 0.0
    %2093 = vmatmul.mubr.f32.gmra.mrb[0].mxu0 %v2001
    %v2094 = vpop.f32.mrb[0].mxu0
    %v2095 = vadd.f32 %v1992, %v2094
    %v2096 = vpop.f32.mrb[0].mxu0
    %2097 = vmatprep.mubr.f32.mxu0 0.0
    %2098 = vmatmul.mubr.f32.gmra.mrb[0].mxu0 %v2004
    %v2099 = vpop.f32.mrb[0].mxu0
    %v2100 = vadd.f32 %v1992, %v2099
    %v2101 = vpop.f32.mrb[0].mxu0
    %2102 = vmatprep.mubr.f32.mxu0 0.0
    %2103 = vmatmul.mubr.f32.gmra.mrb[0].mxu0 %v2007
    %v2104 = vpop.f32.mrb[0].mxu0
    %v2105 = vadd.f32 %v1992, %v2104
    %v2106 = vpop.f32.mrb[0].mxu0
    %2107 = vmatprep.mubr.f32.mxu0 0.0
    %2108 = vmatmul.mubr.f32.gmra.mrb[0].mxu0 %v2010
    %v2109 = vpop.f32.mrb[0].mxu0
    %v2110 = vadd.f32 %v1992, %v2109
    %v2111 = vpop.f32.mrb[0].mxu0
    %2112 = vmatprep.mubr.f32.mxu0 0.0
    %2113 = vmatmul.mubr.f32.gmra.mrb[0].mxu0 %v2013
    %v2114 = vpop.f32.mrb[0].mxu0
    %v2115 = vadd.f32 %v1992, %v2114
    %v2116 = vpop.f32.mrb[0].mxu0
    %2117 = vmatprep.mubr.f32.mxu0 0.0
    %2118 = vmatmul.mubr.f32.gmra.mrb[0].mxu0 %v2016
    %v2119 = vpop.f32.mrb[0].mxu0
    %v2120 = vadd.f32 %v1992, %v2119
    %v2121 = vpop.f32.mrb[0].mxu0
    %2122 = vdwg.mxu0
    %vm2123 = vcmask 130048
    %2124 = vst.msk [vmem:[%s8] sm:$0xff] %vm2123, %v2085
    %2125 = vst.msk [vmem:[%s8 + $0x8] sm:$0xff] %vm2123, %v2090
    %2126 = vst.msk [vmem:[%s8 + $0x10] sm:$0xff] %vm2123, %v2095
    %2127 = vst.msk [vmem:[%s8 + $0x18] sm:$0xff] %vm2123, %v2100
    %2128 = vst.msk [vmem:[%s8 + $0x20] sm:$0xff] %vm2123, %v2105
    %2129 = vst.msk [vmem:[%s8 + $0x28] sm:$0xff] %vm2123, %v2110
    %2130 = vst.msk [vmem:[%s8 + $0x30] sm:$0xff] %vm2123, %v2115
    %2131 = vst.msk [vmem:[%s8 + $0x38] sm:$0xff] %vm2123, %v2120
    // Predicated region
    $region38: #{model_forward.1} parent=1 // pred_check
      _
    $region39: #{model_forward.1} parent=1 // pred_check_branch
      %2133 = sbr.rel (0) target = $region41
    $region40: #{model_forward.1} parent=1 // pred_region
      _
    $region41: #{model_forward.1} parent=1 // pred_fallthru
      _
    // Predicated region
    $region42: #{model_forward.1} parent=1 // pred_check
      _
    $region43: #{model_forward.1} parent=1 // pred_check_branch
      %2135 = sbr.rel (0) target = $region45
    $region44: #{model_forward.1} parent=1 // pred_region
      _
    $region45: #{model_forward.1} parent=1 // pred_fallthru
      _
    %2136 = vsyncpa [#allocation5], 1

</llo_original>
